<compile_context>
chip_gen: v7x
topology: tpu7x:2x2x1
jax: 0.10.0
libtpu: 0.0.40
codegen_flags: <defaults>
</compile_context>

<pallas_src>
import jax
import jax.numpy as jnp
from jax import lax
from jax.experimental import pallas as pl
from jax.experimental.pallas import tpu as pltpu


# -----------------------------------------------------------------------------
# Pallas kernel: one batch tile (Bt columns) per grid step.
# -----------------------------------------------------------------------------
def rnn_classifier_kernel(
    ids_ref,    # (T, Bt)    int32  token ids, time-major, batch on lanes
    len_ref,    # (1, Bt)    int32  valid lengths (0 for batch-padding columns)
    wproj_ref,  # (H, V)     f32    fused  W_ih @ emb^T
    whh_ref,    # (H, H)     f32    weight_hh_l0
    b_ref,      # (H, 1)     f32    b_ih + b_hh (column)
    wcls_ref,   # (H, 1)     f32    classifier weight (column)
    bcls_ref,   # (1, 1)     f32    classifier bias
    out_ref,    # (1, Bt)    f32    logits (batch on lanes -> dense stores)
    xp_ref,     # (T, H, Bt) f32    scratch: hoisted input projections
):
    T, Bt = ids_ref.shape
    H, V = wproj_ref.shape

    wproj = wproj_ref[...]                     # hoisted loads
    whh = whh_ref[...]
    b = b_ref[...]                             # (H, 1)
    lengths = len_ref[...]                     # (1, Bt)

    unroll = True if T <= 16 else 8

    # ---- Phase 1: input projections, fully off the serial h->h chain. -------
    # x_t @ W_ih^T == (W_ih @ emb^T) @ onehot(id_t)  -> one small MXU matmul
    # per step, all independent of h.
    v_iota = lax.broadcasted_iota(jnp.int32, (V, Bt), 0)   # hoisted (no re-broadcast per iter)

    def project(t, carry):
        ids_t = ids_ref[pl.ds(t, 1), :]                     # (1, Bt) int32
        onehot = (v_iota == ids_t).astype(jnp.float32)      # (V, Bt)
        xp_ref[t] = (
            jnp.dot(wproj, onehot, preferred_element_type=jnp.float32) + b
        )
        return carry

    lax.fori_loop(0, T, project, 0, unroll=unroll)

    # ---- Phase 2: serial tanh recurrence with packed-sequence masking. ------
    def step(t, h):
        pre = xp_ref[t] + jnp.dot(whh, h, preferred_element_type=jnp.float32)
        h_new = jnp.tanh(pre)
        # Only update while t < length -> h ends at the state of t = length-1.
        return jnp.where(t < lengths, h_new, h)             # (1,Bt) mask bcast over H

    h0 = jnp.zeros((H, Bt), jnp.float32)
    h_final = lax.fori_loop(0, T, step, h0, unroll=unroll)

    # ---- Phase 3: 1-wide classifier head: VPU multiply + sublane reduce. ----
    out_ref[...] = (
        jnp.sum(h_final * wcls_ref[...], axis=0, keepdims=True) + bcls_ref[...]
    )


# -----------------------------------------------------------------------------
# VMEM budgeting helper (includes (8,128) lane padding).
# -----------------------------------------------------------------------------
def _vmem_padded_bytes(shape, itemsize=4):
    dims = (1, 1) + tuple(int(d) for d in shape)
    lead = 1
    for d in dims[:-2]:
        lead *= d
    sub = -(-dims[-2] // 8) * 8
    lane = -(-dims[-1] // 128) * 128
    return lead * sub * lane * itemsize


# -----------------------------------------------------------------------------
# Wrapper: layout plumbing + pallas_call.
# -----------------------------------------------------------------------------
def rnn_text_classifier(x_ids, lengths, params):
    """x_ids: (B, T) int32 token ids; lengths: (B,) int32; returns (B, 1) f32."""
    emb = params["embedding"]                   # (V, E) frozen
    wih = params["wih"]                         # (H, E)
    whh = params["whh"]                         # (H, H)
    b = (params["bih"] + params["bhh"]).reshape(-1, 1)      # (H, 1)
    wcls = params["wcls"].reshape(-1, 1)        # (H, 1)
    bcls = params["bcls"].reshape(1, 1)         # (1, 1)

    B, T = x_ids.shape
    V, _E = emb.shape
    H = whh.shape[0]

    # Batch on the 128-lane axis: pad to a multiple of 128, tile by Bt=128.
    Bt = 128
    Bp = ((B + Bt - 1) // Bt) * Bt
    num_tiles = Bp // Bt

    # Fuse frozen embedding + input projection into one tiny (H, V) table so the
    # kernel never reads a (T, B, E) gathered activation tensor from HBM.
    wproj = jnp.dot(wih, emb.T, precision=jax.lax.Precision.HIGHEST)  # (H, V)

    ids_tb = jnp.pad(x_ids.astype(jnp.int32), ((0, Bp - B), (0, 0))).T  # (T, Bp)
    len_p = jnp.pad(lengths.astype(jnp.int32), (0, Bp - B)).reshape(1, Bp)

    # VMEM budget per grid step (double-buffered windowed operands + scratch).
    est = (
        2 * _vmem_padded_bytes((T, Bt))
        + 4 * _vmem_padded_bytes((1, Bt))
        + _vmem_padded_bytes((H, V))
        + _vmem_padded_bytes((H, H))
        + 3 * _vmem_padded_bytes((H, 1))
        + _vmem_padded_bytes((T, H, Bt))
        + (4 << 20)                              # compiler temps / vreg spill headroom
    )
    vmem_limit = int(min(max(2 * est, 32 * 1024 * 1024), 64 * 1024 * 1024))

    out = pl.pallas_call(
        rnn_classifier_kernel,
        out_shape=jax.ShapeDtypeStruct((1, Bp), jnp.float32),
        grid=(num_tiles,),
        in_specs=[
            pl.BlockSpec((T, Bt), lambda i: (0, i)),   # ids window over batch
            pl.BlockSpec((1, Bt), lambda i: (0, i)),   # lengths window
            pl.BlockSpec((H, V), lambda i: (0, 0)),    # fused embed+proj table
            pl.BlockSpec((H, H), lambda i: (0, 0)),    # recurrent weight
            pl.BlockSpec((H, 1), lambda i: (0, 0)),    # bias
            pl.BlockSpec((H, 1), lambda i: (0, 0)),    # classifier weight
            pl.BlockSpec((1, 1), lambda i: (0, 0)),    # classifier bias
        ],
        out_specs=pl.BlockSpec((1, Bt), lambda i: (0, i)),
        scratch_shapes=[pltpu.VMEM((T, H, Bt), jnp.float32)],
        compiler_params=pltpu.CompilerParams(
            dimension_semantics=("parallel",),         # batch tiles: 2-TC shard on v7x
            vmem_limit_bytes=vmem_limit,
        ),
    )(ids_tb, len_p, wproj, whh, b, wcls, bcls)

    # Padded batch columns (length 0) carry logit == bcls; sliced off here.
    return out[0, :B].reshape(B, 1)


# -----------------------------------------------------------------------------
# Pure-JAX reference (mirrors PyTorch packed-sequence semantics).
# -----------------------------------------------------------------------------
def reference_forward(x_ids, lengths, params):
    emb = params["embedding"]
    x = jnp.take(emb, x_ids, axis=0).astype(jnp.float32)    # (B, T, E)
    B, T, _ = x.shape
    H = params["whh"].shape[0]
    b = params["bih"] + params["bhh"]
    len2d = lengths.reshape(B, 1).astype(jnp.int32)

    h = jnp.zeros((B, H), jnp.float32)
    for t in range(T):
        pre = x[:, t, :] @ params["wih"].T + h @ params["whh"].T + b
        h = jnp.where(t < len2d, jnp.tanh(pre), h)
    return h @ params["wcls"].T + params["bcls"]


# -----------------------------------------------------------------------------
# Deterministic parameter init (shapes match the PyTorch module's __init__).
# -----------------------------------------------------------------------------
def init_params(key, vocab_size, embed_dim, hidden):
    ks = jax.random.split(key, 7)
    bound = 1.0 / float(hidden) ** 0.5

    def u(k, shape):
        return jax.random.uniform(k, shape, jnp.float32, -bound, bound)

    return {
        "embedding": jax.random.normal(ks[0], (vocab_size, embed_dim), jnp.float32),
        # nn.RNN: weight_ih_l0 (H,E), weight_hh_l0 (H,H), bias_ih_l0 / bias_hh_l0 (H,)
        "wih": u(ks[1], (hidden, embed_dim)),
        "whh": u(ks[2], (hidden, hidden)),
        "bih": u(ks[3], (hidden,)),
        "bhh": u(ks[4], (hidden,)),
        # nn.Linear(32, 1): weight (1, H), bias (1,)
        "wcls": u(ks[5], (1, hidden)),
        "bcls": u(ks[6], (1,)),
    }


if __name__ == "__main__":
    key = jax.random.PRNGKey(0)
    VOCAB, EMBED, HIDDEN = 20, 16, 32
    B, T = 2, 8

    k_param, k_ids = jax.random.split(key)
    params = init_params(k_param, VOCAB, EMBED, HIDDEN)

    x_ids = jax.random.randint(k_ids, (B, T), 0, VOCAB, dtype=jnp.int32)
    lengths = jnp.array([8, 5], dtype=jnp.int32)   # padded sequence lengths

    out = jax.block_until_ready(rnn_text_classifier(x_ids, lengths, params))
    ref = jax.block_until_ready(reference_forward(x_ids, lengths, params))

    assert out.shape == (B, 1), out.shape
    assert jnp.allclose(out, ref, rtol=2e-3, atol=2e-3), (out, ref)

    print("KERNEL_OK")
</pallas_src>

<mosaic_0001>
module attributes {stable_mosaic.version = 11 : i64} {
  func.func @rnn_classifier_kernel(%arg0: i32, %arg1: memref<8x128xi32, #tpu.memory_space<vmem>>, %arg2: memref<1x128xi32, #tpu.memory_space<vmem>>, %arg3: memref<32x20xf32, #tpu.memory_space<vmem>>, %arg4: memref<32x32xf32, #tpu.memory_space<vmem>>, %arg5: memref<32x1xf32, #tpu.memory_space<vmem>>, %arg6: memref<32x1xf32, #tpu.memory_space<vmem>>, %arg7: memref<1x1xf32, #tpu.memory_space<vmem>>, %arg8: memref<1x128xf32, #tpu.memory_space<vmem>>, %arg9: memref<8x32x128xf32, #tpu.memory_space<vmem>>) attributes {dimension_semantics = [#tpu.dimension_semantics<parallel>], iteration_bounds = array<i64: 1>, scalar_prefetch = 0 : i64, scratch_operands = 1 : i64, tpu.core_type = #tpu.core_type<tc>, window_params = [{transform_indices = @transform_0, window_bounds = array<i64: 8, 128>}, {transform_indices = @transform_1, window_bounds = array<i64: 1, 128>}, {pipeline_mode = #tpu.pipeline_mode<synchronous>, transform_indices = @transform_2, window_bounds = array<i64: 32, 20>}, {pipeline_mode = #tpu.pipeline_mode<synchronous>, transform_indices = @transform_3, window_bounds = array<i64: 32, 32>}, {pipeline_mode = #tpu.pipeline_mode<synchronous>, transform_indices = @transform_4, window_bounds = array<i64: 32, 1>}, {pipeline_mode = #tpu.pipeline_mode<synchronous>, transform_indices = @transform_5, window_bounds = array<i64: 32, 1>}, {pipeline_mode = #tpu.pipeline_mode<synchronous>, transform_indices = @transform_6, window_bounds = array<i64: 1, 1>}, {transform_indices = @transform_7, window_bounds = array<i64: 1, 128>}]} {
    %c0 = arith.constant 0 : index
    %c0_0 = arith.constant 0 : index
    %0 = vector.load %arg3[%c0, %c0_0] : memref<32x20xf32, #tpu.memory_space<vmem>>, vector<32x20xf32>
    %c0_1 = arith.constant 0 : index
    %c0_2 = arith.constant 0 : index
    %1 = vector.load %arg4[%c0_1, %c0_2] : memref<32x32xf32, #tpu.memory_space<vmem>>, vector<32x32xf32>
    %c0_3 = arith.constant 0 : index
    %c0_4 = arith.constant 0 : index
    %2 = vector.load %arg5[%c0_3, %c0_4] : memref<32x1xf32, #tpu.memory_space<vmem>>, vector<32x1xf32>
    %c0_5 = arith.constant 0 : index
    %c0_6 = arith.constant 0 : index
    %3 = vector.load %arg2[%c0_5, %c0_6] : memref<1x128xi32, #tpu.memory_space<vmem>>, vector<1x128xi32>
    %4 = tpu.iota {dimensions = array<i32: 0>} : vector<20x128xi32>
    %c0_i32 = arith.constant 0 : i32
    %5 = arith.index_cast %c0_i32 : i32 to index
    %c0_7 = arith.constant 0 : index
    %6 = vector.load %arg1[%5, %c0_7] : memref<8x128xi32, #tpu.memory_space<vmem>>, vector<1x128xi32>
    %7 = vector.broadcast %6 : vector<1x128xi32> to vector<20x128xi32>
    %8 = arith.cmpi eq, %4, %7 : vector<20x128xi32>
    %9 = arith.extui %8 : vector<20x128xi1> to vector<20x128xi32>
    %10 = arith.sitofp %9 : vector<20x128xi32> to vector<20x128xf32>
    %cst = arith.constant dense<0.000000e+00> : vector<32x128xf32>
    %11 = tpu.matmul %0, %10, %cst {dimension_numbers = #tpu.dot_dimension_numbers<[1], [0], [0], [1], [0, 0, 1, 1], [], []>} : vector<32x20xf32>, vector<20x128xf32>, vector<32x128xf32> -> vector<32x128xf32>
    %12 = vector.broadcast %2 : vector<32x1xf32> to vector<32x128xf32>
    %13 = arith.addf %11, %12 : vector<32x128xf32>
    %14 = arith.index_cast %c0_i32 : i32 to index
    %c0_8 = arith.constant 0 : index
    %c0_9 = arith.constant 0 : index
    %15 = vector.load %arg9[%14, %c0_8, %c0_9] : memref<8x32x128xf32, #tpu.memory_space<vmem>>, vector<1x32x128xf32>
    %16 = vector.shape_cast %15 : vector<1x32x128xf32> to vector<32x128xf32>
    %17 = vector.shape_cast %13 : vector<32x128xf32> to vector<1x32x128xf32>
    tpu.vector_store %arg9[%14, %c0_8, %c0_9], %17 {strides = array<i32>} : memref<8x32x128xf32, #tpu.memory_space<vmem>>, vector<1x32x128xf32>,
    %c1_i32 = arith.constant 1 : i32
    %18 = arith.index_cast %c1_i32 : i32 to index
    %c0_10 = arith.constant 0 : index
    %19 = vector.load %arg1[%18, %c0_10] : memref<8x128xi32, #tpu.memory_space<vmem>>, vector<1x128xi32>
    %20 = vector.broadcast %19 : vector<1x128xi32> to vector<20x128xi32>
    %21 = arith.cmpi eq, %4, %20 : vector<20x128xi32>
    %22 = arith.extui %21 : vector<20x128xi1> to vector<20x128xi32>
    %23 = arith.sitofp %22 : vector<20x128xi32> to vector<20x128xf32>
    %cst_11 = arith.constant dense<0.000000e+00> : vector<32x128xf32>
    %24 = tpu.matmul %0, %23, %cst_11 {dimension_numbers = #tpu.dot_dimension_numbers<[1], [0], [0], [1], [0, 0, 1, 1], [], []>} : vector<32x20xf32>, vector<20x128xf32>, vector<32x128xf32> -> vector<32x128xf32>
    %25 = vector.broadcast %2 : vector<32x1xf32> to vector<32x128xf32>
    %26 = arith.addf %24, %25 : vector<32x128xf32>
    %27 = arith.index_cast %c1_i32 : i32 to index
    %c0_12 = arith.constant 0 : index
    %c0_13 = arith.constant 0 : index
    %28 = vector.load %arg9[%27, %c0_12, %c0_13] : memref<8x32x128xf32, #tpu.memory_space<vmem>>, vector<1x32x128xf32>
    %29 = vector.shape_cast %28 : vector<1x32x128xf32> to vector<32x128xf32>
    %30 = vector.shape_cast %26 : vector<32x128xf32> to vector<1x32x128xf32>
    tpu.vector_store %arg9[%27, %c0_12, %c0_13], %30 {strides = array<i32>} : memref<8x32x128xf32, #tpu.memory_space<vmem>>, vector<1x32x128xf32>,
    %c2_i32 = arith.constant 2 : i32
    %31 = arith.index_cast %c2_i32 : i32 to index
    %c0_14 = arith.constant 0 : index
    %32 = vector.load %arg1[%31, %c0_14] : memref<8x128xi32, #tpu.memory_space<vmem>>, vector<1x128xi32>
    %33 = vector.broadcast %32 : vector<1x128xi32> to vector<20x128xi32>
    %34 = arith.cmpi eq, %4, %33 : vector<20x128xi32>
    %35 = arith.extui %34 : vector<20x128xi1> to vector<20x128xi32>
    %36 = arith.sitofp %35 : vector<20x128xi32> to vector<20x128xf32>
    %cst_15 = arith.constant dense<0.000000e+00> : vector<32x128xf32>
    %37 = tpu.matmul %0, %36, %cst_15 {dimension_numbers = #tpu.dot_dimension_numbers<[1], [0], [0], [1], [0, 0, 1, 1], [], []>} : vector<32x20xf32>, vector<20x128xf32>, vector<32x128xf32> -> vector<32x128xf32>
    %38 = vector.broadcast %2 : vector<32x1xf32> to vector<32x128xf32>
    %39 = arith.addf %37, %38 : vector<32x128xf32>
    %40 = arith.index_cast %c2_i32 : i32 to index
    %c0_16 = arith.constant 0 : index
    %c0_17 = arith.constant 0 : index
    %41 = vector.load %arg9[%40, %c0_16, %c0_17] : memref<8x32x128xf32, #tpu.memory_space<vmem>>, vector<1x32x128xf32>
    %42 = vector.shape_cast %41 : vector<1x32x128xf32> to vector<32x128xf32>
    %43 = vector.shape_cast %39 : vector<32x128xf32> to vector<1x32x128xf32>
    tpu.vector_store %arg9[%40, %c0_16, %c0_17], %43 {strides = array<i32>} : memref<8x32x128xf32, #tpu.memory_space<vmem>>, vector<1x32x128xf32>,
    %c3_i32 = arith.constant 3 : i32
    %44 = arith.index_cast %c3_i32 : i32 to index
    %c0_18 = arith.constant 0 : index
    %45 = vector.load %arg1[%44, %c0_18] : memref<8x128xi32, #tpu.memory_space<vmem>>, vector<1x128xi32>
    %46 = vector.broadcast %45 : vector<1x128xi32> to vector<20x128xi32>
    %47 = arith.cmpi eq, %4, %46 : vector<20x128xi32>
    %48 = arith.extui %47 : vector<20x128xi1> to vector<20x128xi32>
    %49 = arith.sitofp %48 : vector<20x128xi32> to vector<20x128xf32>
    %cst_19 = arith.constant dense<0.000000e+00> : vector<32x128xf32>
    %50 = tpu.matmul %0, %49, %cst_19 {dimension_numbers = #tpu.dot_dimension_numbers<[1], [0], [0], [1], [0, 0, 1, 1], [], []>} : vector<32x20xf32>, vector<20x128xf32>, vector<32x128xf32> -> vector<32x128xf32>
    %51 = vector.broadcast %2 : vector<32x1xf32> to vector<32x128xf32>
    %52 = arith.addf %50, %51 : vector<32x128xf32>
    %53 = arith.index_cast %c3_i32 : i32 to index
    %c0_20 = arith.constant 0 : index
    %c0_21 = arith.constant 0 : index
    %54 = vector.load %arg9[%53, %c0_20, %c0_21] : memref<8x32x128xf32, #tpu.memory_space<vmem>>, vector<1x32x128xf32>
    %55 = vector.shape_cast %54 : vector<1x32x128xf32> to vector<32x128xf32>
    %56 = vector.shape_cast %52 : vector<32x128xf32> to vector<1x32x128xf32>
    tpu.vector_store %arg9[%53, %c0_20, %c0_21], %56 {strides = array<i32>} : memref<8x32x128xf32, #tpu.memory_space<vmem>>, vector<1x32x128xf32>,
    %c4_i32 = arith.constant 4 : i32
    %57 = arith.index_cast %c4_i32 : i32 to index
    %c0_22 = arith.constant 0 : index
    %58 = vector.load %arg1[%57, %c0_22] : memref<8x128xi32, #tpu.memory_space<vmem>>, vector<1x128xi32>
    %59 = vector.broadcast %58 : vector<1x128xi32> to vector<20x128xi32>
    %60 = arith.cmpi eq, %4, %59 : vector<20x128xi32>
    %61 = arith.extui %60 : vector<20x128xi1> to vector<20x128xi32>
    %62 = arith.sitofp %61 : vector<20x128xi32> to vector<20x128xf32>
    %cst_23 = arith.constant dense<0.000000e+00> : vector<32x128xf32>
    %63 = tpu.matmul %0, %62, %cst_23 {dimension_numbers = #tpu.dot_dimension_numbers<[1], [0], [0], [1], [0, 0, 1, 1], [], []>} : vector<32x20xf32>, vector<20x128xf32>, vector<32x128xf32> -> vector<32x128xf32>
    %64 = vector.broadcast %2 : vector<32x1xf32> to vector<32x128xf32>
    %65 = arith.addf %63, %64 : vector<32x128xf32>
    %66 = arith.index_cast %c4_i32 : i32 to index
    %c0_24 = arith.constant 0 : index
    %c0_25 = arith.constant 0 : index
    %67 = vector.load %arg9[%66, %c0_24, %c0_25] : memref<8x32x128xf32, #tpu.memory_space<vmem>>, vector<1x32x128xf32>
    %68 = vector.shape_cast %67 : vector<1x32x128xf32> to vector<32x128xf32>
    %69 = vector.shape_cast %65 : vector<32x128xf32> to vector<1x32x128xf32>
    tpu.vector_store %arg9[%66, %c0_24, %c0_25], %69 {strides = array<i32>} : memref<8x32x128xf32, #tpu.memory_space<vmem>>, vector<1x32x128xf32>,
    %c5_i32 = arith.constant 5 : i32
    %70 = arith.index_cast %c5_i32 : i32 to index
    %c0_26 = arith.constant 0 : index
    %71 = vector.load %arg1[%70, %c0_26] : memref<8x128xi32, #tpu.memory_space<vmem>>, vector<1x128xi32>
    %72 = vector.broadcast %71 : vector<1x128xi32> to vector<20x128xi32>
    %73 = arith.cmpi eq, %4, %72 : vector<20x128xi32>
    %74 = arith.extui %73 : vector<20x128xi1> to vector<20x128xi32>
    %75 = arith.sitofp %74 : vector<20x128xi32> to vector<20x128xf32>
    %cst_27 = arith.constant dense<0.000000e+00> : vector<32x128xf32>
    %76 = tpu.matmul %0, %75, %cst_27 {dimension_numbers = #tpu.dot_dimension_numbers<[1], [0], [0], [1], [0, 0, 1, 1], [], []>} : vector<32x20xf32>, vector<20x128xf32>, vector<32x128xf32> -> vector<32x128xf32>
    %77 = vector.broadcast %2 : vector<32x1xf32> to vector<32x128xf32>
    %78 = arith.addf %76, %77 : vector<32x128xf32>
    %79 = arith.index_cast %c5_i32 : i32 to index
    %c0_28 = arith.constant 0 : index
    %c0_29 = arith.constant 0 : index
    %80 = vector.load %arg9[%79, %c0_28, %c0_29] : memref<8x32x128xf32, #tpu.memory_space<vmem>>, vector<1x32x128xf32>
    %81 = vector.shape_cast %80 : vector<1x32x128xf32> to vector<32x128xf32>
    %82 = vector.shape_cast %78 : vector<32x128xf32> to vector<1x32x128xf32>
    tpu.vector_store %arg9[%79, %c0_28, %c0_29], %82 {strides = array<i32>} : memref<8x32x128xf32, #tpu.memory_space<vmem>>, vector<1x32x128xf32>,
    %c6_i32 = arith.constant 6 : i32
    %83 = arith.index_cast %c6_i32 : i32 to index
    %c0_30 = arith.constant 0 : index
    %84 = vector.load %arg1[%83, %c0_30] : memref<8x128xi32, #tpu.memory_space<vmem>>, vector<1x128xi32>
    %85 = vector.broadcast %84 : vector<1x128xi32> to vector<20x128xi32>
    %86 = arith.cmpi eq, %4, %85 : vector<20x128xi32>
    %87 = arith.extui %86 : vector<20x128xi1> to vector<20x128xi32>
    %88 = arith.sitofp %87 : vector<20x128xi32> to vector<20x128xf32>
    %cst_31 = arith.constant dense<0.000000e+00> : vector<32x128xf32>
    %89 = tpu.matmul %0, %88, %cst_31 {dimension_numbers = #tpu.dot_dimension_numbers<[1], [0], [0], [1], [0, 0, 1, 1], [], []>} : vector<32x20xf32>, vector<20x128xf32>, vector<32x128xf32> -> vector<32x128xf32>
    %90 = vector.broadcast %2 : vector<32x1xf32> to vector<32x128xf32>
    %91 = arith.addf %89, %90 : vector<32x128xf32>
    %92 = arith.index_cast %c6_i32 : i32 to index
    %c0_32 = arith.constant 0 : index
    %c0_33 = arith.constant 0 : index
    %93 = vector.load %arg9[%92, %c0_32, %c0_33] : memref<8x32x128xf32, #tpu.memory_space<vmem>>, vector<1x32x128xf32>
    %94 = vector.shape_cast %93 : vector<1x32x128xf32> to vector<32x128xf32>
    %95 = vector.shape_cast %91 : vector<32x128xf32> to vector<1x32x128xf32>
    tpu.vector_store %arg9[%92, %c0_32, %c0_33], %95 {strides = array<i32>} : memref<8x32x128xf32, #tpu.memory_space<vmem>>, vector<1x32x128xf32>,
    %c7_i32 = arith.constant 7 : i32
    %96 = arith.index_cast %c7_i32 : i32 to index
    %c0_34 = arith.constant 0 : index
    %97 = vector.load %arg1[%96, %c0_34] : memref<8x128xi32, #tpu.memory_space<vmem>>, vector<1x128xi32>
    %98 = vector.broadcast %97 : vector<1x128xi32> to vector<20x128xi32>
    %99 = arith.cmpi eq, %4, %98 : vector<20x128xi32>
    %100 = arith.extui %99 : vector<20x128xi1> to vector<20x128xi32>
    %101 = arith.sitofp %100 : vector<20x128xi32> to vector<20x128xf32>
    %cst_35 = arith.constant dense<0.000000e+00> : vector<32x128xf32>
    %102 = tpu.matmul %0, %101, %cst_35 {dimension_numbers = #tpu.dot_dimension_numbers<[1], [0], [0], [1], [0, 0, 1, 1], [], []>} : vector<32x20xf32>, vector<20x128xf32>, vector<32x128xf32> -> vector<32x128xf32>
    %103 = vector.broadcast %2 : vector<32x1xf32> to vector<32x128xf32>
    %104 = arith.addf %102, %103 : vector<32x128xf32>
    %105 = arith.index_cast %c7_i32 : i32 to index
    %c0_36 = arith.constant 0 : index
    %c0_37 = arith.constant 0 : index
    %106 = vector.load %arg9[%105, %c0_36, %c0_37] : memref<8x32x128xf32, #tpu.memory_space<vmem>>, vector<1x32x128xf32>
    %107 = vector.shape_cast %106 : vector<1x32x128xf32> to vector<32x128xf32>
    %108 = vector.shape_cast %104 : vector<32x128xf32> to vector<1x32x128xf32>
    tpu.vector_store %arg9[%105, %c0_36, %c0_37], %108 {strides = array<i32>} : memref<8x32x128xf32, #tpu.memory_space<vmem>>, vector<1x32x128xf32>,
    %c8_i32 = arith.constant 8 : i32
    %cst_38 = arith.constant 0.000000e+00 : f32
    %109 = vector.broadcast %cst_38 : f32 to vector<32x128xf32>
    %c0_i32_39 = arith.constant 0 : i32
    %110 = arith.index_cast %c0_i32_39 : i32 to index
    %c0_40 = arith.constant 0 : index
    %c0_41 = arith.constant 0 : index
    %111 = vector.load %arg9[%110, %c0_40, %c0_41] : memref<8x32x128xf32, #tpu.memory_space<vmem>>, vector<1x32x128xf32>
    %112 = vector.shape_cast %111 : vector<1x32x128xf32> to vector<32x128xf32>
    %cst_42 = arith.constant dense<0.000000e+00> : vector<32x128xf32>
    %113 = tpu.matmul %1, %109, %cst_42 {dimension_numbers = #tpu.dot_dimension_numbers<[1], [0], [0], [1], [0, 0, 1, 1], [], []>} : vector<32x32xf32>, vector<32x128xf32>, vector<32x128xf32> -> vector<32x128xf32>
    %114 = arith.addf %112, %113 : vector<32x128xf32>
    %115 = math.tanh %114 : vector<32x128xf32>
    %116 = vector.broadcast %c0_i32_39 : i32 to vector<1x128xi32>
    %117 = arith.cmpi slt, %116, %3 : vector<1x128xi32>
    %118 = vector.shape_cast %117 : vector<1x128xi1> to vector<1x128xi1>
    %119 = vector.broadcast %118 : vector<1x128xi1> to vector<32x128xi1>
    %120 = arith.select %119, %115, %109 : vector<32x128xi1>, vector<32x128xf32>
    %c1_i32_43 = arith.constant 1 : i32
    %121 = arith.index_cast %c1_i32_43 : i32 to index
    %c0_44 = arith.constant 0 : index
    %c0_45 = arith.constant 0 : index
    %122 = vector.load %arg9[%121, %c0_44, %c0_45] : memref<8x32x128xf32, #tpu.memory_space<vmem>>, vector<1x32x128xf32>
    %123 = vector.shape_cast %122 : vector<1x32x128xf32> to vector<32x128xf32>
    %cst_46 = arith.constant dense<0.000000e+00> : vector<32x128xf32>
    %124 = tpu.matmul %1, %120, %cst_46 {dimension_numbers = #tpu.dot_dimension_numbers<[1], [0], [0], [1], [0, 0, 1, 1], [], []>} : vector<32x32xf32>, vector<32x128xf32>, vector<32x128xf32> -> vector<32x128xf32>
    %125 = arith.addf %123, %124 : vector<32x128xf32>
    %126 = math.tanh %125 : vector<32x128xf32>
    %127 = vector.broadcast %c1_i32_43 : i32 to vector<1x128xi32>
    %128 = arith.cmpi slt, %127, %3 : vector<1x128xi32>
    %129 = vector.shape_cast %128 : vector<1x128xi1> to vector<1x128xi1>
    %130 = vector.broadcast %129 : vector<1x128xi1> to vector<32x128xi1>
    %131 = arith.select %130, %126, %120 : vector<32x128xi1>, vector<32x128xf32>
    %c2_i32_47 = arith.constant 2 : i32
    %132 = arith.index_cast %c2_i32_47 : i32 to index
    %c0_48 = arith.constant 0 : index
    %c0_49 = arith.constant 0 : index
    %133 = vector.load %arg9[%132, %c0_48, %c0_49] : memref<8x32x128xf32, #tpu.memory_space<vmem>>, vector<1x32x128xf32>
    %134 = vector.shape_cast %133 : vector<1x32x128xf32> to vector<32x128xf32>
    %cst_50 = arith.constant dense<0.000000e+00> : vector<32x128xf32>
    %135 = tpu.matmul %1, %131, %cst_50 {dimension_numbers = #tpu.dot_dimension_numbers<[1], [0], [0], [1], [0, 0, 1, 1], [], []>} : vector<32x32xf32>, vector<32x128xf32>, vector<32x128xf32> -> vector<32x128xf32>
    %136 = arith.addf %134, %135 : vector<32x128xf32>
    %137 = math.tanh %136 : vector<32x128xf32>
    %138 = vector.broadcast %c2_i32_47 : i32 to vector<1x128xi32>
    %139 = arith.cmpi slt, %138, %3 : vector<1x128xi32>
    %140 = vector.shape_cast %139 : vector<1x128xi1> to vector<1x128xi1>
    %141 = vector.broadcast %140 : vector<1x128xi1> to vector<32x128xi1>
    %142 = arith.select %141, %137, %131 : vector<32x128xi1>, vector<32x128xf32>
    %c3_i32_51 = arith.constant 3 : i32
    %143 = arith.index_cast %c3_i32_51 : i32 to index
    %c0_52 = arith.constant 0 : index
    %c0_53 = arith.constant 0 : index
    %144 = vector.load %arg9[%143, %c0_52, %c0_53] : memref<8x32x128xf32, #tpu.memory_space<vmem>>, vector<1x32x128xf32>
    %145 = vector.shape_cast %144 : vector<1x32x128xf32> to vector<32x128xf32>
    %cst_54 = arith.constant dense<0.000000e+00> : vector<32x128xf32>
    %146 = tpu.matmul %1, %142, %cst_54 {dimension_numbers = #tpu.dot_dimension_numbers<[1], [0], [0], [1], [0, 0, 1, 1], [], []>} : vector<32x32xf32>, vector<32x128xf32>, vector<32x128xf32> -> vector<32x128xf32>
    %147 = arith.addf %145, %146 : vector<32x128xf32>
    %148 = math.tanh %147 : vector<32x128xf32>
    %149 = vector.broadcast %c3_i32_51 : i32 to vector<1x128xi32>
    %150 = arith.cmpi slt, %149, %3 : vector<1x128xi32>
    %151 = vector.shape_cast %150 : vector<1x128xi1> to vector<1x128xi1>
    %152 = vector.broadcast %151 : vector<1x128xi1> to vector<32x128xi1>
    %153 = arith.select %152, %148, %142 : vector<32x128xi1>, vector<32x128xf32>
    %c4_i32_55 = arith.constant 4 : i32
    %154 = arith.index_cast %c4_i32_55 : i32 to index
    %c0_56 = arith.constant 0 : index
    %c0_57 = arith.constant 0 : index
    %155 = vector.load %arg9[%154, %c0_56, %c0_57] : memref<8x32x128xf32, #tpu.memory_space<vmem>>, vector<1x32x128xf32>
    %156 = vector.shape_cast %155 : vector<1x32x128xf32> to vector<32x128xf32>
    %cst_58 = arith.constant dense<0.000000e+00> : vector<32x128xf32>
    %157 = tpu.matmul %1, %153, %cst_58 {dimension_numbers = #tpu.dot_dimension_numbers<[1], [0], [0], [1], [0, 0, 1, 1], [], []>} : vector<32x32xf32>, vector<32x128xf32>, vector<32x128xf32> -> vector<32x128xf32>
    %158 = arith.addf %156, %157 : vector<32x128xf32>
    %159 = math.tanh %158 : vector<32x128xf32>
    %160 = vector.broadcast %c4_i32_55 : i32 to vector<1x128xi32>
    %161 = arith.cmpi slt, %160, %3 : vector<1x128xi32>
    %162 = vector.shape_cast %161 : vector<1x128xi1> to vector<1x128xi1>
    %163 = vector.broadcast %162 : vector<1x128xi1> to vector<32x128xi1>
    %164 = arith.select %163, %159, %153 : vector<32x128xi1>, vector<32x128xf32>
    %c5_i32_59 = arith.constant 5 : i32
    %165 = arith.index_cast %c5_i32_59 : i32 to index
    %c0_60 = arith.constant 0 : index
    %c0_61 = arith.constant 0 : index
    %166 = vector.load %arg9[%165, %c0_60, %c0_61] : memref<8x32x128xf32, #tpu.memory_space<vmem>>, vector<1x32x128xf32>
    %167 = vector.shape_cast %166 : vector<1x32x128xf32> to vector<32x128xf32>
    %cst_62 = arith.constant dense<0.000000e+00> : vector<32x128xf32>
    %168 = tpu.matmul %1, %164, %cst_62 {dimension_numbers = #tpu.dot_dimension_numbers<[1], [0], [0], [1], [0, 0, 1, 1], [], []>} : vector<32x32xf32>, vector<32x128xf32>, vector<32x128xf32> -> vector<32x128xf32>
    %169 = arith.addf %167, %168 : vector<32x128xf32>
    %170 = math.tanh %169 : vector<32x128xf32>
    %171 = vector.broadcast %c5_i32_59 : i32 to vector<1x128xi32>
    %172 = arith.cmpi slt, %171, %3 : vector<1x128xi32>
    %173 = vector.shape_cast %172 : vector<1x128xi1> to vector<1x128xi1>
    %174 = vector.broadcast %173 : vector<1x128xi1> to vector<32x128xi1>
    %175 = arith.select %174, %170, %164 : vector<32x128xi1>, vector<32x128xf32>
    %c6_i32_63 = arith.constant 6 : i32
    %176 = arith.index_cast %c6_i32_63 : i32 to index
    %c0_64 = arith.constant 0 : index
    %c0_65 = arith.constant 0 : index
    %177 = vector.load %arg9[%176, %c0_64, %c0_65] : memref<8x32x128xf32, #tpu.memory_space<vmem>>, vector<1x32x128xf32>
    %178 = vector.shape_cast %177 : vector<1x32x128xf32> to vector<32x128xf32>
    %cst_66 = arith.constant dense<0.000000e+00> : vector<32x128xf32>
    %179 = tpu.matmul %1, %175, %cst_66 {dimension_numbers = #tpu.dot_dimension_numbers<[1], [0], [0], [1], [0, 0, 1, 1], [], []>} : vector<32x32xf32>, vector<32x128xf32>, vector<32x128xf32> -> vector<32x128xf32>
    %180 = arith.addf %178, %179 : vector<32x128xf32>
    %181 = math.tanh %180 : vector<32x128xf32>
    %182 = vector.broadcast %c6_i32_63 : i32 to vector<1x128xi32>
    %183 = arith.cmpi slt, %182, %3 : vector<1x128xi32>
    %184 = vector.shape_cast %183 : vector<1x128xi1> to vector<1x128xi1>
    %185 = vector.broadcast %184 : vector<1x128xi1> to vector<32x128xi1>
    %186 = arith.select %185, %181, %175 : vector<32x128xi1>, vector<32x128xf32>
    %c7_i32_67 = arith.constant 7 : i32
    %187 = arith.index_cast %c7_i32_67 : i32 to index
    %c0_68 = arith.constant 0 : index
    %c0_69 = arith.constant 0 : index
    %188 = vector.load %arg9[%187, %c0_68, %c0_69] : memref<8x32x128xf32, #tpu.memory_space<vmem>>, vector<1x32x128xf32>
    %189 = vector.shape_cast %188 : vector<1x32x128xf32> to vector<32x128xf32>
    %cst_70 = arith.constant dense<0.000000e+00> : vector<32x128xf32>
    %190 = tpu.matmul %1, %186, %cst_70 {dimension_numbers = #tpu.dot_dimension_numbers<[1], [0], [0], [1], [0, 0, 1, 1], [], []>} : vector<32x32xf32>, vector<32x128xf32>, vector<32x128xf32> -> vector<32x128xf32>
    %191 = arith.addf %189, %190 : vector<32x128xf32>
    %192 = math.tanh %191 : vector<32x128xf32>
    %193 = vector.broadcast %c7_i32_67 : i32 to vector<1x128xi32>
    %194 = arith.cmpi slt, %193, %3 : vector<1x128xi32>
    %195 = vector.shape_cast %194 : vector<1x128xi1> to vector<1x128xi1>
    %196 = vector.broadcast %195 : vector<1x128xi1> to vector<32x128xi1>
    %197 = arith.select %196, %192, %186 : vector<32x128xi1>, vector<32x128xf32>
    %c8_i32_71 = arith.constant 8 : i32
    %c0_72 = arith.constant 0 : index
    %c0_73 = arith.constant 0 : index
    %198 = vector.load %arg6[%c0_72, %c0_73] : memref<32x1xf32, #tpu.memory_space<vmem>>, vector<32x1xf32>
    %199 = vector.broadcast %198 : vector<32x1xf32> to vector<32x128xf32>
    %200 = arith.mulf %197, %199 : vector<32x128xf32>
    %cst_74 = arith.constant dense<0.000000e+00> : vector<128xf32>
    %201 = vector.multi_reduction <add>, %200, %cst_74 [0] : vector<32x128xf32> to vector<128xf32>
    %202 = vector.shape_cast %201 : vector<128xf32> to vector<1x128xf32>
    %c0_75 = arith.constant 0 : index
    %c0_76 = arith.constant 0 : index
    %203 = vector.load %arg7[%c0_75, %c0_76] : memref<1x1xf32, #tpu.memory_space<vmem>>, vector<1x1xf32>
    %204 = vector.broadcast %203 : vector<1x1xf32> to vector<1x128xf32>
    %205 = arith.addf %202, %204 : vector<1x128xf32>
    %c0_77 = arith.constant 0 : index
    %c0_78 = arith.constant 0 : index
    %206 = vector.load %arg8[%c0_77, %c0_78] : memref<1x128xf32, #tpu.memory_space<vmem>>, vector<1x128xf32>
    tpu.vector_store %arg8[%c0_77, %c0_78], %205 {strides = array<i32>} : memref<1x128xf32, #tpu.memory_space<vmem>>, vector<1x128xf32>,
    return
  }
  func.func @transform_0(%arg0: i32) -> (i32, i32) {
    %c0_i32 = arith.constant 0 : i32
    %c0_i32_0 = arith.constant 0 : i32
    return %c0_i32, %arg0 : i32, i32
  }
  func.func @transform_1(%arg0: i32) -> (i32, i32) {
    %c0_i32 = arith.constant 0 : i32
    %c0_i32_0 = arith.constant 0 : i32
    return %c0_i32, %arg0 : i32, i32
  }
  func.func @transform_2(%arg0: i32) -> (i32, i32) {
    %c0_i32 = arith.constant 0 : i32
    %c0_i32_0 = arith.constant 0 : i32
    %c0_i32_1 = arith.constant 0 : i32
    return %c0_i32, %c0_i32_0 : i32, i32
  }
  func.func @transform_3(%arg0: i32) -> (i32, i32) {
    %c0_i32 = arith.constant 0 : i32
    %c0_i32_0 = arith.constant 0 : i32
    %c0_i32_1 = arith.constant 0 : i32
    return %c0_i32, %c0_i32_0 : i32, i32
  }
  func.func @transform_4(%arg0: i32) -> (i32, i32) {
    %c0_i32 = arith.constant 0 : i32
    %c0_i32_0 = arith.constant 0 : i32
    %c0_i32_1 = arith.constant 0 : i32
    return %c0_i32, %c0_i32_0 : i32, i32
  }
  func.func @transform_5(%arg0: i32) -> (i32, i32) {
    %c0_i32 = arith.constant 0 : i32
    %c0_i32_0 = arith.constant 0 : i32
    %c0_i32_1 = arith.constant 0 : i32
    return %c0_i32, %c0_i32_0 : i32, i32
  }
  func.func @transform_6(%arg0: i32) -> (i32, i32) {
    %c0_i32 = arith.constant 0 : i32
    %c0_i32_0 = arith.constant 0 : i32
    %c0_i32_1 = arith.constant 0 : i32
    return %c0_i32, %c0_i32_0 : i32, i32
  }
  func.func @transform_7(%arg0: i32) -> (i32, i32) {
    %c0_i32 = arith.constant 0 : i32
    %c0_i32_0 = arith.constant 0 : i32
    return %c0_i32, %arg0 : i32, i32
  }
}

</mosaic_0001>

<llo_original>
// kernel: tpu_custom_call.1
$region0: #{tpu_custom_call.1}
  #allocation0 [shape = 'u32[]', space=smem, size = 0x4, offset = 0x4, fixed_abs, tag = 'smem constant byte address 0x4 - core index']
  #allocation1 [shape = 'u32[144,128]{1,0:T(1,128)}', space=vmem, size = 0x12000, scoped, tag = 'internal scratch']
  #allocation2 [shape = 'f32[8,32,128]{2,1,0:T(8,128)}', space=vmem, size = 0x20000, scoped, tag = 'scratch operand']
  #allocation3 [shape = 'f32[1,1]{1,0:T(1,128)S(1)}', space=vmem, size = 0x200, scoped, tag = 'scoped memory for tpu_custom_call.1']
  %s0 = inlined_call_operand.vmem [shape: s32[8,128], index: 0, kind: input, shape index: {}]
  %s1 = inlined_call_operand.vmem [shape: s32[1,128], index: 1, kind: input, shape index: {}]
  %s2 = inlined_call_operand.vmem [shape: f32[32,20], index: 2, kind: input, shape index: {}]
  %s3 = inlined_call_operand.vmem [shape: f32[32,32], index: 3, kind: input, shape index: {}]
  %s4 = inlined_call_operand.vmem [shape: f32[32,1], index: 4, kind: input, shape index: {}]
  %s5 = inlined_call_operand.vmem [shape: f32[32,1], index: 5, kind: input, shape index: {}]
  %s6 = inlined_call_operand.<no memory space> [shape: f32[1,1], index: 6, kind: input, shape index: {}]
  %s7 = inlined_call_operand.hbm [shape: f32[1,128], index: 7, kind: output, shape index: {}]
  %s8 = sld [smem:[#allocation0]]
  $region38: #{tpu_custom_call.1} parent=0
    _
  %s10 = ssub.s32 1, %s8
  %s11 = scalar_select 0, %s10, %s8
  %v12 = vstv %s6
  %13 = vst [vmem:[#allocation3] sm:$0x1] %v12
  $region1: #{tpu_custom_call.1} parent=0
    #allocation4 [shape = 'u8[512]{0}', space=vmem, size = 0x400, scoped, tag = 'output window, operand 0, single buffered']
    #allocation5 [shape = 's32[1]{0}', space=sflag, size = 0x4, scoped, tag = 'scoped memory for tpu_custom_call.1']
    %14 = vsyncpa [#allocation5], 0
    // Predicated region
    $region2: #{tpu_custom_call.1} parent=1 // pred_check
      _
    $region3: #{tpu_custom_call.1} parent=1 // pred_check_branch
      %16 = sbr.rel (0) target = $region5
    $region4: #{tpu_custom_call.1} parent=1 // pred_region
      _
    $region5: #{tpu_custom_call.1} parent=1 // pred_fallthru
      _
    // Predicated region
    $region6: #{tpu_custom_call.1} parent=1 // pred_check
      _
    $region7: #{tpu_custom_call.1} parent=1 // pred_check_branch
      %18 = sbr.rel (0) target = $region9
    $region8: #{tpu_custom_call.1} parent=1 // pred_region
      _
    $region9: #{tpu_custom_call.1} parent=1 // pred_fallthru
      _
    // Predicated region
    $region10: #{tpu_custom_call.1} parent=1 // pred_check
      _
    $region11: #{tpu_custom_call.1} parent=1 // pred_check_branch
      %20 = sbr.rel (0) target = $region13
    $region12: #{tpu_custom_call.1} parent=1 // pred_region
      _
    $region13: #{tpu_custom_call.1} parent=1 // pred_fallthru
      _
    // Predicated region
    $region14: #{tpu_custom_call.1} parent=1 // pred_check
      _
    $region15: #{tpu_custom_call.1} parent=1 // pred_check_branch
      %22 = sbr.rel (0) target = $region17
    $region16: #{tpu_custom_call.1} parent=1 // pred_region
      _
    $region17: #{tpu_custom_call.1} parent=1 // pred_fallthru
      _
    // Predicated region
    $region18: #{tpu_custom_call.1} parent=1 // pred_check
      _
    $region19: #{tpu_custom_call.1} parent=1 // pred_check_branch
      %24 = sbr.rel (0) target = $region21
    $region20: #{tpu_custom_call.1} parent=1 // pred_region
      _
    $region21: #{tpu_custom_call.1} parent=1 // pred_fallthru
      _
    // Predicated region
    $region22: #{tpu_custom_call.1} parent=1 // pred_check
      _
    $region23: #{tpu_custom_call.1} parent=1 // pred_check_branch
      %26 = sbr.rel (0) target = $region25
    $region24: #{tpu_custom_call.1} parent=1 // pred_region
      _
    $region25: #{tpu_custom_call.1} parent=1 // pred_fallthru
      _
    // Predicated region
    $region26: #{tpu_custom_call.1} parent=1 // pred_check
      _
    $region27: #{tpu_custom_call.1} parent=1 // pred_check_branch
      %28 = sbr.rel (0) target = $region29
    $region28: #{tpu_custom_call.1} parent=1 // pred_region
      _
    $region29: #{tpu_custom_call.1} parent=1 // pred_fallthru
      _
    %v29 = vld [vmem:[%s2] sm:$0xff]
    %v30 = vld [vmem:[%s2 + $0x8] sm:$0xff]
    %v31 = vld [vmem:[%s2 + $0x10] sm:$0xff]
    %v32 = vld [vmem:[%s2 + $0x18] sm:$0xff]
    %v33 = vld [vmem:[%s3] sm:$0xff]
    %v34 = vld [vmem:[%s3 + $0x8] sm:$0xff]
    %v35 = vld [vmem:[%s3 + $0x10] sm:$0xff]
    %v36 = vld [vmem:[%s3 + $0x18] sm:$0xff]
    %v37 = vld [vmem:[%s4] sm:$0xff]
    %v38 = vld [vmem:[%s4 + $0x8] sm:$0xff]
    %v39 = vld [vmem:[%s4 + $0x10] sm:$0xff]
    %v40 = vld [vmem:[%s4 + $0x18] sm:$0xff]
    %v41 = vld [vmem:[%s1] sm:$0x1]
    %v42 = vlaneseq
    %v43 = vshrl.u32 %v42, 7
    %v44 = vadd.s32 %v43, 8
    %v45 = vadd.s32 %v43, 16
    %v46 = vld [vmem:[%s0] sm:$0x1]
    %v47 = vlaneseq
    %v48 = vshrl.u32 %v47, 7
    %v49 = vsub.s32 0, %v48
    %v50 = vrot.slane %v46, %v49
    %vm51 = vcmp.eq.s32.totalorder %v43, %v50
    %vm52 = vcmp.eq.s32.totalorder %v44, %v50
    %vm53 = vcmp.eq.s32.totalorder %v45, %v50
    %v54 = vsel %vm51, 1, 0
    %v55 = vsel %vm52, 1, 0
    %v56 = vsel %vm53, 1, 0
    %v57 = vcvt.s32.f32 %v54
    %v58 = vcvt.s32.f32 %v55
    %v59 = vcvt.s32.f32 %v56
    %61 = vset.pattern.permute.xlu0 0
    %62 = vperm.xlu0 %61, %v37
    %v63 = vpop.permute.xlu0 %62
    %66 = vset.pattern.permute.xlu0 0
    %67 = vperm.xlu0 %66, %v38
    %v68 = vpop.permute.xlu0 %67
    %71 = vset.pattern.permute.xlu0 0
    %72 = vperm.xlu0 %71, %v39
    %v73 = vpop.permute.xlu0 %72
    %76 = vset.pattern.permute.xlu0 0
    %77 = vperm.xlu0 %76, %v40
    %v78 = vpop.permute.xlu0 %77
    %vm80 = vcmask 162816
    %v82 = vsel %vm80, %v29, 0
    %v85 = vsel %vm80, %v30, 0
    %v88 = vsel %vm80, %v31, 0
    %v91 = vsel %vm80, %v32, 0
    %vm93 = vcmask 1043456
    %v95 = vsel %vm93, %v59, 0
    %97 = vmatprep.subr.mxu0 0.0
    %98 = vmatpush1.msra.mxu0 %v57
    %99 = vmatprep.subr.mxu0 0.0
    %100 = vmatpush1.msra.mxu0 %v58
    %101 = vmatprep.subr.mxu0 0.0
    %102 = vmatpush1.msra.mxu0 %v95
    %103 = vmatprep.subr.mxu0 0.0
    %104 = vmatpush1.msra.mxu0 0.0
    %105 = vmatprep.subr.mxu0 0.0
    %106 = vmatpush1.msra.mxu0 0.0
    %107 = vmatprep.subr.mxu0 0.0
    %108 = vmatpush1.msra.mxu0 0.0
    %109 = vmatprep.subr.mxu0 0.0
    %110 = vmatpush1.msra.mxu0 0.0
    %111 = vmatprep.subr.mxu0 0.0
    %112 = vmatpush1.msra.mxu0 0.0
    %113 = vmatprep.subr.mxu0 0.0
    %114 = vmatpush1.msra.mxu0 0.0
    %115 = vmatprep.subr.mxu0 0.0
    %116 = vmatpush1.msra.mxu0 0.0
    %117 = vmatprep.subr.mxu0 0.0
    %118 = vmatpush1.msra.mxu0 0.0
    %119 = vmatprep.subr.mxu0 0.0
    %120 = vmatpush1.msra.mxu0 0.0
    %121 = vmatprep.subr.mxu0 0.0
    %122 = vmatpush1.msra.mxu0 0.0
    %123 = vmatprep.subr.mxu0 0.0
    %124 = vmatpush1.msra.mxu0 0.0
    %125 = vmatprep.subr.mxu0 0.0
    %126 = vmatpush1.msra.mxu0 0.0
    %127 = vmatprep.subr.mxu0 0.0
    %128 = vmatpush1.msra.mxu0 0.0
    %129 = vmatprep.subr.mxu0 0.0
    %130 = vmatpush1.msra.mxu0 0.0
    %131 = vmatprep.subr.mxu0 0.0
    %132 = vmatpush1.msra.mxu0 0.0
    %133 = vmatprep.subr.mxu0 0.0
    %134 = vmatpush1.msra.mxu0 0.0
    %135 = vmatprep.subr.mxu0 0.0
    %136 = vmatpush1.msra.mxu0 0.0
    %137 = vmatprep.subr.mxu0 0.0
    %138 = vmatpush1.msra.mxu0 0.0
    %139 = vmatprep.subr.mxu0 0.0
    %140 = vmatpush1.msra.mxu0 0.0
    %141 = vmatprep.subr.mxu0 0.0
    %142 = vmatpush1.msra.mxu0 0.0
    %143 = vmatprep.subr.mxu0 0.0
    %144 = vmatpush1.msra.mxu0 0.0
    %145 = vmatprep.subr.mxu0 0.0
    %146 = vmatpush1.msra.mxu0 0.0
    %147 = vmatprep.subr.mxu0 0.0
    %148 = vmatpush1.msra.mxu0 0.0
    %149 = vmatprep.subr.mxu0 0.0
    %150 = vmatpush1.msra.mxu0 0.0
    %151 = vmatprep.subr.mxu0 0.0
    %152 = vmatpush1.msra.mxu0 0.0
    %153 = vmatprep.subr.mxu0 0.0
    %154 = vmatpush1.msra.mxu0 0.0
    %155 = vmatprep.subr.mxu0 0.0
    %156 = vmatpush1.msra.mxu0 0.0
    %157 = vmatprep.subr.mxu0 0.0
    %158 = vmatpush1.msra.mxu0 0.0
    %159 = vmatprep.subr.mxu0 0.0
    %160 = vmatpush1.msra.mxu0 0.0
    %161 = vmatprep.mubr.f32.mxu0 0.0
    %162 = vmatmul.mubr.f32.gmra.mrb[0].mxu0 %v82
    %v163 = vpop.f32.mrb[0].mxu0
    %v164 = vadd.f32 %v63, %v163
    %v165 = vpop.f32.mrb[0].mxu0
    %166 = vmatprep.mubr.f32.mxu0 0.0
    %167 = vmatmul.mubr.f32.gmra.mrb[0].mxu0 %v85
    %v168 = vpop.f32.mrb[0].mxu0
    %v169 = vadd.f32 %v68, %v168
    %v170 = vpop.f32.mrb[0].mxu0
    %171 = vmatprep.mubr.f32.mxu0 0.0
    %172 = vmatmul.mubr.f32.gmra.mrb[0].mxu0 %v88
    %v173 = vpop.f32.mrb[0].mxu0
    %v174 = vadd.f32 %v73, %v173
    %v175 = vpop.f32.mrb[0].mxu0
    %176 = vmatprep.mubr.f32.mxu0 0.0
    %177 = vmatmul.mubr.f32.gmra.mrb[0].mxu0 %v91
    %v178 = vpop.f32.mrb[0].mxu0
    %v179 = vadd.f32 %v78, %v178
    %v180 = vpop.f32.mrb[0].mxu0
    %181 = vdwg.mxu0
    %182 = vst [vmem:[#allocation2] sm:$0xff] %v164
    %183 = vst [vmem:[#allocation2 + $0x8] sm:$0xff] %v169
    %184 = vst [vmem:[#allocation2 + $0x10] sm:$0xff] %v174
    %185 = vst [vmem:[#allocation2 + $0x18] sm:$0xff] %v179
    %v186 = vld [vmem:[%s0 + $0x1] sm:$0x1]
    %v187 = vlaneseq
    %v188 = vshrl.u32 %v187, 7
    %v189 = vsub.s32 0, %v188
    %v190 = vrot.slane %v186, %v189
    %vm191 = vcmp.eq.s32.totalorder %v43, %v190
    %vm192 = vcmp.eq.s32.totalorder %v44, %v190
    %vm193 = vcmp.eq.s32.totalorder %v45, %v190
    %v194 = vsel %vm191, 1, 0
    %v195 = vsel %vm192, 1, 0
    %v196 = vsel %vm193, 1, 0
    %v197 = vcvt.s32.f32 %v194
    %v198 = vcvt.s32.f32 %v195
    %v199 = vcvt.s32.f32 %v196
    %v201 = vsel %vm93, %v199, 0
    %203 = vmatprep.subr.mxu0 0.0
    %204 = vmatpush1.msra.mxu0 %v197
    %205 = vmatprep.subr.mxu0 0.0
    %206 = vmatpush1.msra.mxu0 %v198
    %207 = vmatprep.subr.mxu0 0.0
    %208 = vmatpush1.msra.mxu0 %v201
    %209 = vmatprep.subr.mxu0 0.0
    %210 = vmatpush1.msra.mxu0 0.0
    %211 = vmatprep.subr.mxu0 0.0
    %212 = vmatpush1.msra.mxu0 0.0
    %213 = vmatprep.subr.mxu0 0.0
    %214 = vmatpush1.msra.mxu0 0.0
    %215 = vmatprep.subr.mxu0 0.0
    %216 = vmatpush1.msra.mxu0 0.0
    %217 = vmatprep.subr.mxu0 0.0
    %218 = vmatpush1.msra.mxu0 0.0
    %219 = vmatprep.subr.mxu0 0.0
    %220 = vmatpush1.msra.mxu0 0.0
    %221 = vmatprep.subr.mxu0 0.0
    %222 = vmatpush1.msra.mxu0 0.0
    %223 = vmatprep.subr.mxu0 0.0
    %224 = vmatpush1.msra.mxu0 0.0
    %225 = vmatprep.subr.mxu0 0.0
    %226 = vmatpush1.msra.mxu0 0.0
    %227 = vmatprep.subr.mxu0 0.0
    %228 = vmatpush1.msra.mxu0 0.0
    %229 = vmatprep.subr.mxu0 0.0
    %230 = vmatpush1.msra.mxu0 0.0
    %231 = vmatprep.subr.mxu0 0.0
    %232 = vmatpush1.msra.mxu0 0.0
    %233 = vmatprep.subr.mxu0 0.0
    %234 = vmatpush1.msra.mxu0 0.0
    %235 = vmatprep.subr.mxu0 0.0
    %236 = vmatpush1.msra.mxu0 0.0
    %237 = vmatprep.subr.mxu0 0.0
    %238 = vmatpush1.msra.mxu0 0.0
    %239 = vmatprep.subr.mxu0 0.0
    %240 = vmatpush1.msra.mxu0 0.0
    %241 = vmatprep.subr.mxu0 0.0
    %242 = vmatpush1.msra.mxu0 0.0
    %243 = vmatprep.subr.mxu0 0.0
    %244 = vmatpush1.msra.mxu0 0.0
    %245 = vmatprep.subr.mxu0 0.0
    %246 = vmatpush1.msra.mxu0 0.0
    %247 = vmatprep.subr.mxu0 0.0
    %248 = vmatpush1.msra.mxu0 0.0
    %249 = vmatprep.subr.mxu0 0.0
    %250 = vmatpush1.msra.mxu0 0.0
    %251 = vmatprep.subr.mxu0 0.0
    %252 = vmatpush1.msra.mxu0 0.0
    %253 = vmatprep.subr.mxu0 0.0
    %254 = vmatpush1.msra.mxu0 0.0
    %255 = vmatprep.subr.mxu0 0.0
    %256 = vmatpush1.msra.mxu0 0.0
    %257 = vmatprep.subr.mxu0 0.0
    %258 = vmatpush1.msra.mxu0 0.0
    %259 = vmatprep.subr.mxu0 0.0
    %260 = vmatpush1.msra.mxu0 0.0
    %261 = vmatprep.subr.mxu0 0.0
    %262 = vmatpush1.msra.mxu0 0.0
    %263 = vmatprep.subr.mxu0 0.0
    %264 = vmatpush1.msra.mxu0 0.0
    %265 = vmatprep.subr.mxu0 0.0
    %266 = vmatpush1.msra.mxu0 0.0
    %267 = vmatprep.mubr.f32.mxu0 0.0
    %268 = vmatmul.mubr.f32.gmra.mrb[0].mxu0 %v82
    %v269 = vpop.f32.mrb[0].mxu0
    %v270 = vadd.f32 %v63, %v269
    %v271 = vpop.f32.mrb[0].mxu0
    %272 = vmatprep.mubr.f32.mxu0 0.0
    %273 = vmatmul.mubr.f32.gmra.mrb[0].mxu0 %v85
    %v274 = vpop.f32.mrb[0].mxu0
    %v275 = vadd.f32 %v68, %v274
    %v276 = vpop.f32.mrb[0].mxu0
    %277 = vmatprep.mubr.f32.mxu0 0.0
    %278 = vmatmul.mubr.f32.gmra.mrb[0].mxu0 %v88
    %v279 = vpop.f32.mrb[0].mxu0
    %v280 = vadd.f32 %v73, %v279
    %v281 = vpop.f32.mrb[0].mxu0
    %282 = vmatprep.mubr.f32.mxu0 0.0
    %283 = vmatmul.mubr.f32.gmra.mrb[0].mxu0 %v91
    %v284 = vpop.f32.mrb[0].mxu0
    %v285 = vadd.f32 %v78, %v284
    %v286 = vpop.f32.mrb[0].mxu0
    %287 = vdwg.mxu0
    %s288 = scalar_lea.vmem [#allocation2], 32
    %289 = vst [vmem:[%s288] sm:$0xff] %v270
    %290 = vst [vmem:[%s288 + $0x8] sm:$0xff] %v275
    %291 = vst [vmem:[%s288 + $0x10] sm:$0xff] %v280
    %292 = vst [vmem:[%s288 + $0x18] sm:$0xff] %v285
    %v293 = vld [vmem:[%s0 + $0x2] sm:$0x1]
    %v294 = vlaneseq
    %v295 = vshrl.u32 %v294, 7
    %v296 = vsub.s32 0, %v295
    %v297 = vrot.slane %v293, %v296
    %vm298 = vcmp.eq.s32.totalorder %v43, %v297
    %vm299 = vcmp.eq.s32.totalorder %v44, %v297
    %vm300 = vcmp.eq.s32.totalorder %v45, %v297
    %v301 = vsel %vm298, 1, 0
    %v302 = vsel %vm299, 1, 0
    %v303 = vsel %vm300, 1, 0
    %v304 = vcvt.s32.f32 %v301
    %v305 = vcvt.s32.f32 %v302
    %v306 = vcvt.s32.f32 %v303
    %v308 = vsel %vm93, %v306, 0
    %310 = vmatprep.subr.mxu0 0.0
    %311 = vmatpush1.msra.mxu0 %v304
    %312 = vmatprep.subr.mxu0 0.0
    %313 = vmatpush1.msra.mxu0 %v305
    %314 = vmatprep.subr.mxu0 0.0
    %315 = vmatpush1.msra.mxu0 %v308
    %316 = vmatprep.subr.mxu0 0.0
    %317 = vmatpush1.msra.mxu0 0.0
    %318 = vmatprep.subr.mxu0 0.0
    %319 = vmatpush1.msra.mxu0 0.0
    %320 = vmatprep.subr.mxu0 0.0
    %321 = vmatpush1.msra.mxu0 0.0
    %322 = vmatprep.subr.mxu0 0.0
    %323 = vmatpush1.msra.mxu0 0.0
    %324 = vmatprep.subr.mxu0 0.0
    %325 = vmatpush1.msra.mxu0 0.0
    %326 = vmatprep.subr.mxu0 0.0
    %327 = vmatpush1.msra.mxu0 0.0
    %328 = vmatprep.subr.mxu0 0.0
    %329 = vmatpush1.msra.mxu0 0.0
    %330 = vmatprep.subr.mxu0 0.0
    %331 = vmatpush1.msra.mxu0 0.0
    %332 = vmatprep.subr.mxu0 0.0
    %333 = vmatpush1.msra.mxu0 0.0
    %334 = vmatprep.subr.mxu0 0.0
    %335 = vmatpush1.msra.mxu0 0.0
    %336 = vmatprep.subr.mxu0 0.0
    %337 = vmatpush1.msra.mxu0 0.0
    %338 = vmatprep.subr.mxu0 0.0
    %339 = vmatpush1.msra.mxu0 0.0
    %340 = vmatprep.subr.mxu0 0.0
    %341 = vmatpush1.msra.mxu0 0.0
    %342 = vmatprep.subr.mxu0 0.0
    %343 = vmatpush1.msra.mxu0 0.0
    %344 = vmatprep.subr.mxu0 0.0
    %345 = vmatpush1.msra.mxu0 0.0
    %346 = vmatprep.subr.mxu0 0.0
    %347 = vmatpush1.msra.mxu0 0.0
    %348 = vmatprep.subr.mxu0 0.0
    %349 = vmatpush1.msra.mxu0 0.0
    %350 = vmatprep.subr.mxu0 0.0
    %351 = vmatpush1.msra.mxu0 0.0
    %352 = vmatprep.subr.mxu0 0.0
    %353 = vmatpush1.msra.mxu0 0.0
    %354 = vmatprep.subr.mxu0 0.0
    %355 = vmatpush1.msra.mxu0 0.0
    %356 = vmatprep.subr.mxu0 0.0
    %357 = vmatpush1.msra.mxu0 0.0
    %358 = vmatprep.subr.mxu0 0.0
    %359 = vmatpush1.msra.mxu0 0.0
    %360 = vmatprep.subr.mxu0 0.0
    %361 = vmatpush1.msra.mxu0 0.0
    %362 = vmatprep.subr.mxu0 0.0
    %363 = vmatpush1.msra.mxu0 0.0
    %364 = vmatprep.subr.mxu0 0.0
    %365 = vmatpush1.msra.mxu0 0.0
    %366 = vmatprep.subr.mxu0 0.0
    %367 = vmatpush1.msra.mxu0 0.0
    %368 = vmatprep.subr.mxu0 0.0
    %369 = vmatpush1.msra.mxu0 0.0
    %370 = vmatprep.subr.mxu0 0.0
    %371 = vmatpush1.msra.mxu0 0.0
    %372 = vmatprep.subr.mxu0 0.0
    %373 = vmatpush1.msra.mxu0 0.0
    %374 = vmatprep.mubr.f32.mxu0 0.0
    %375 = vmatmul.mubr.f32.gmra.mrb[0].mxu0 %v82
    %v376 = vpop.f32.mrb[0].mxu0
    %v377 = vadd.f32 %v63, %v376
    %v378 = vpop.f32.mrb[0].mxu0
    %379 = vmatprep.mubr.f32.mxu0 0.0
    %380 = vmatmul.mubr.f32.gmra.mrb[0].mxu0 %v85
    %v381 = vpop.f32.mrb[0].mxu0
    %v382 = vadd.f32 %v68, %v381
    %v383 = vpop.f32.mrb[0].mxu0
    %384 = vmatprep.mubr.f32.mxu0 0.0
    %385 = vmatmul.mubr.f32.gmra.mrb[0].mxu0 %v88
    %v386 = vpop.f32.mrb[0].mxu0
    %v387 = vadd.f32 %v73, %v386
    %v388 = vpop.f32.mrb[0].mxu0
    %389 = vmatprep.mubr.f32.mxu0 0.0
    %390 = vmatmul.mubr.f32.gmra.mrb[0].mxu0 %v91
    %v391 = vpop.f32.mrb[0].mxu0
    %v392 = vadd.f32 %v78, %v391
    %v393 = vpop.f32.mrb[0].mxu0
    %394 = vdwg.mxu0
    %s395 = scalar_lea.vmem [#allocation2], 64
    %396 = vst [vmem:[%s395] sm:$0xff] %v377
    %397 = vst [vmem:[%s395 + $0x8] sm:$0xff] %v382
    %398 = vst [vmem:[%s395 + $0x10] sm:$0xff] %v387
    %399 = vst [vmem:[%s395 + $0x18] sm:$0xff] %v392
    %v400 = vld [vmem:[%s0 + $0x3] sm:$0x1]
    %v401 = vlaneseq
    %v402 = vshrl.u32 %v401, 7
    %v403 = vsub.s32 0, %v402
    %v404 = vrot.slane %v400, %v403
    %vm405 = vcmp.eq.s32.totalorder %v43, %v404
    %vm406 = vcmp.eq.s32.totalorder %v44, %v404
    %vm407 = vcmp.eq.s32.totalorder %v45, %v404
    %v408 = vsel %vm405, 1, 0
    %v409 = vsel %vm406, 1, 0
    %v410 = vsel %vm407, 1, 0
    %v411 = vcvt.s32.f32 %v408
    %v412 = vcvt.s32.f32 %v409
    %v413 = vcvt.s32.f32 %v410
    %v415 = vsel %vm93, %v413, 0
    %417 = vmatprep.subr.mxu0 0.0
    %418 = vmatpush1.msra.mxu0 %v411
    %419 = vmatprep.subr.mxu0 0.0
    %420 = vmatpush1.msra.mxu0 %v412
    %421 = vmatprep.subr.mxu0 0.0
    %422 = vmatpush1.msra.mxu0 %v415
    %423 = vmatprep.subr.mxu0 0.0
    %424 = vmatpush1.msra.mxu0 0.0
    %425 = vmatprep.subr.mxu0 0.0
    %426 = vmatpush1.msra.mxu0 0.0
    %427 = vmatprep.subr.mxu0 0.0
    %428 = vmatpush1.msra.mxu0 0.0
    %429 = vmatprep.subr.mxu0 0.0
    %430 = vmatpush1.msra.mxu0 0.0
    %431 = vmatprep.subr.mxu0 0.0
    %432 = vmatpush1.msra.mxu0 0.0
    %433 = vmatprep.subr.mxu0 0.0
    %434 = vmatpush1.msra.mxu0 0.0
    %435 = vmatprep.subr.mxu0 0.0
    %436 = vmatpush1.msra.mxu0 0.0
    %437 = vmatprep.subr.mxu0 0.0
    %438 = vmatpush1.msra.mxu0 0.0
    %439 = vmatprep.subr.mxu0 0.0
    %440 = vmatpush1.msra.mxu0 0.0
    %441 = vmatprep.subr.mxu0 0.0
    %442 = vmatpush1.msra.mxu0 0.0
    %443 = vmatprep.subr.mxu0 0.0
    %444 = vmatpush1.msra.mxu0 0.0
    %445 = vmatprep.subr.mxu0 0.0
    %446 = vmatpush1.msra.mxu0 0.0
    %447 = vmatprep.subr.mxu0 0.0
    %448 = vmatpush1.msra.mxu0 0.0
    %449 = vmatprep.subr.mxu0 0.0
    %450 = vmatpush1.msra.mxu0 0.0
    %451 = vmatprep.subr.mxu0 0.0
    %452 = vmatpush1.msra.mxu0 0.0
    %453 = vmatprep.subr.mxu0 0.0
    %454 = vmatpush1.msra.mxu0 0.0
    %455 = vmatprep.subr.mxu0 0.0
    %456 = vmatpush1.msra.mxu0 0.0
    %457 = vmatprep.subr.mxu0 0.0
    %458 = vmatpush1.msra.mxu0 0.0
    %459 = vmatprep.subr.mxu0 0.0
    %460 = vmatpush1.msra.mxu0 0.0
    %461 = vmatprep.subr.mxu0 0.0
    %462 = vmatpush1.msra.mxu0 0.0
    %463 = vmatprep.subr.mxu0 0.0
    %464 = vmatpush1.msra.mxu0 0.0
    %465 = vmatprep.subr.mxu0 0.0
    %466 = vmatpush1.msra.mxu0 0.0
    %467 = vmatprep.subr.mxu0 0.0
    %468 = vmatpush1.msra.mxu0 0.0
    %469 = vmatprep.subr.mxu0 0.0
    %470 = vmatpush1.msra.mxu0 0.0
    %471 = vmatprep.subr.mxu0 0.0
    %472 = vmatpush1.msra.mxu0 0.0
    %473 = vmatprep.subr.mxu0 0.0
    %474 = vmatpush1.msra.mxu0 0.0
    %475 = vmatprep.subr.mxu0 0.0
    %476 = vmatpush1.msra.mxu0 0.0
    %477 = vmatprep.subr.mxu0 0.0
    %478 = vmatpush1.msra.mxu0 0.0
    %479 = vmatprep.subr.mxu0 0.0
    %480 = vmatpush1.msra.mxu0 0.0
    %481 = vmatprep.mubr.f32.mxu0 0.0
    %482 = vmatmul.mubr.f32.gmra.mrb[0].mxu0 %v82
    %v483 = vpop.f32.mrb[0].mxu0
    %v484 = vadd.f32 %v63, %v483
    %v485 = vpop.f32.mrb[0].mxu0
    %486 = vmatprep.mubr.f32.mxu0 0.0
    %487 = vmatmul.mubr.f32.gmra.mrb[0].mxu0 %v85
    %v488 = vpop.f32.mrb[0].mxu0
    %v489 = vadd.f32 %v68, %v488
    %v490 = vpop.f32.mrb[0].mxu0
    %491 = vmatprep.mubr.f32.mxu0 0.0
    %492 = vmatmul.mubr.f32.gmra.mrb[0].mxu0 %v88
    %v493 = vpop.f32.mrb[0].mxu0
    %v494 = vadd.f32 %v73, %v493
    %v495 = vpop.f32.mrb[0].mxu0
    %496 = vmatprep.mubr.f32.mxu0 0.0
    %497 = vmatmul.mubr.f32.gmra.mrb[0].mxu0 %v91
    %v498 = vpop.f32.mrb[0].mxu0
    %v499 = vadd.f32 %v78, %v498
    %v500 = vpop.f32.mrb[0].mxu0
    %501 = vdwg.mxu0
    %s502 = scalar_lea.vmem [#allocation2], 96
    %503 = vst [vmem:[%s502] sm:$0xff] %v484
    %504 = vst [vmem:[%s502 + $0x8] sm:$0xff] %v489
    %505 = vst [vmem:[%s502 + $0x10] sm:$0xff] %v494
    %506 = vst [vmem:[%s502 + $0x18] sm:$0xff] %v499
    %v507 = vld [vmem:[%s0 + $0x4] sm:$0x1]
    %v508 = vlaneseq
    %v509 = vshrl.u32 %v508, 7
    %v510 = vsub.s32 0, %v509
    %v511 = vrot.slane %v507, %v510
    %vm512 = vcmp.eq.s32.totalorder %v43, %v511
    %vm513 = vcmp.eq.s32.totalorder %v44, %v511
    %vm514 = vcmp.eq.s32.totalorder %v45, %v511
    %v515 = vsel %vm512, 1, 0
    %v516 = vsel %vm513, 1, 0
    %v517 = vsel %vm514, 1, 0
    %v518 = vcvt.s32.f32 %v515
    %v519 = vcvt.s32.f32 %v516
    %v520 = vcvt.s32.f32 %v517
    %v522 = vsel %vm93, %v520, 0
    %524 = vmatprep.subr.mxu0 0.0
    %525 = vmatpush1.msra.mxu0 %v518
    %526 = vmatprep.subr.mxu0 0.0
    %527 = vmatpush1.msra.mxu0 %v519
    %528 = vmatprep.subr.mxu0 0.0
    %529 = vmatpush1.msra.mxu0 %v522
    %530 = vmatprep.subr.mxu0 0.0
    %531 = vmatpush1.msra.mxu0 0.0
    %532 = vmatprep.subr.mxu0 0.0
    %533 = vmatpush1.msra.mxu0 0.0
    %534 = vmatprep.subr.mxu0 0.0
    %535 = vmatpush1.msra.mxu0 0.0
    %536 = vmatprep.subr.mxu0 0.0
    %537 = vmatpush1.msra.mxu0 0.0
    %538 = vmatprep.subr.mxu0 0.0
    %539 = vmatpush1.msra.mxu0 0.0
    %540 = vmatprep.subr.mxu0 0.0
    %541 = vmatpush1.msra.mxu0 0.0
    %542 = vmatprep.subr.mxu0 0.0
    %543 = vmatpush1.msra.mxu0 0.0
    %544 = vmatprep.subr.mxu0 0.0
    %545 = vmatpush1.msra.mxu0 0.0
    %546 = vmatprep.subr.mxu0 0.0
    %547 = vmatpush1.msra.mxu0 0.0
    %548 = vmatprep.subr.mxu0 0.0
    %549 = vmatpush1.msra.mxu0 0.0
    %550 = vmatprep.subr.mxu0 0.0
    %551 = vmatpush1.msra.mxu0 0.0
    %552 = vmatprep.subr.mxu0 0.0
    %553 = vmatpush1.msra.mxu0 0.0
    %554 = vmatprep.subr.mxu0 0.0
    %555 = vmatpush1.msra.mxu0 0.0
    %556 = vmatprep.subr.mxu0 0.0
    %557 = vmatpush1.msra.mxu0 0.0
    %558 = vmatprep.subr.mxu0 0.0
    %559 = vmatpush1.msra.mxu0 0.0
    %560 = vmatprep.subr.mxu0 0.0
    %561 = vmatpush1.msra.mxu0 0.0
    %562 = vmatprep.subr.mxu0 0.0
    %563 = vmatpush1.msra.mxu0 0.0
    %564 = vmatprep.subr.mxu0 0.0
    %565 = vmatpush1.msra.mxu0 0.0
    %566 = vmatprep.subr.mxu0 0.0
    %567 = vmatpush1.msra.mxu0 0.0
    %568 = vmatprep.subr.mxu0 0.0
    %569 = vmatpush1.msra.mxu0 0.0
    %570 = vmatprep.subr.mxu0 0.0
    %571 = vmatpush1.msra.mxu0 0.0
    %572 = vmatprep.subr.mxu0 0.0
    %573 = vmatpush1.msra.mxu0 0.0
    %574 = vmatprep.subr.mxu0 0.0
    %575 = vmatpush1.msra.mxu0 0.0
    %576 = vmatprep.subr.mxu0 0.0
    %577 = vmatpush1.msra.mxu0 0.0
    %578 = vmatprep.subr.mxu0 0.0
    %579 = vmatpush1.msra.mxu0 0.0
    %580 = vmatprep.subr.mxu0 0.0
    %581 = vmatpush1.msra.mxu0 0.0
    %582 = vmatprep.subr.mxu0 0.0
    %583 = vmatpush1.msra.mxu0 0.0
    %584 = vmatprep.subr.mxu0 0.0
    %585 = vmatpush1.msra.mxu0 0.0
    %586 = vmatprep.subr.mxu0 0.0
    %587 = vmatpush1.msra.mxu0 0.0
    %588 = vmatprep.mubr.f32.mxu0 0.0
    %589 = vmatmul.mubr.f32.gmra.mrb[0].mxu0 %v82
    %v590 = vpop.f32.mrb[0].mxu0
    %v591 = vadd.f32 %v63, %v590
    %v592 = vpop.f32.mrb[0].mxu0
    %593 = vmatprep.mubr.f32.mxu0 0.0
    %594 = vmatmul.mubr.f32.gmra.mrb[0].mxu0 %v85
    %v595 = vpop.f32.mrb[0].mxu0
    %v596 = vadd.f32 %v68, %v595
    %v597 = vpop.f32.mrb[0].mxu0
    %598 = vmatprep.mubr.f32.mxu0 0.0
    %599 = vmatmul.mubr.f32.gmra.mrb[0].mxu0 %v88
    %v600 = vpop.f32.mrb[0].mxu0
    %v601 = vadd.f32 %v73, %v600
    %v602 = vpop.f32.mrb[0].mxu0
    %603 = vmatprep.mubr.f32.mxu0 0.0
    %604 = vmatmul.mubr.f32.gmra.mrb[0].mxu0 %v91
    %v605 = vpop.f32.mrb[0].mxu0
    %v606 = vadd.f32 %v78, %v605
    %v607 = vpop.f32.mrb[0].mxu0
    %608 = vdwg.mxu0
    %s609 = scalar_lea.vmem [#allocation2], 128
    %610 = vst [vmem:[%s609] sm:$0xff] %v591
    %611 = vst [vmem:[%s609 + $0x8] sm:$0xff] %v596
    %612 = vst [vmem:[%s609 + $0x10] sm:$0xff] %v601
    %613 = vst [vmem:[%s609 + $0x18] sm:$0xff] %v606
    %v614 = vld [vmem:[%s0 + $0x5] sm:$0x1]
    %v615 = vlaneseq
    %v616 = vshrl.u32 %v615, 7
    %v617 = vsub.s32 0, %v616
    %v618 = vrot.slane %v614, %v617
    %vm619 = vcmp.eq.s32.totalorder %v43, %v618
    %vm620 = vcmp.eq.s32.totalorder %v44, %v618
    %vm621 = vcmp.eq.s32.totalorder %v45, %v618
    %v622 = vsel %vm619, 1, 0
    %v623 = vsel %vm620, 1, 0
    %v624 = vsel %vm621, 1, 0
    %v625 = vcvt.s32.f32 %v622
    %v626 = vcvt.s32.f32 %v623
    %v627 = vcvt.s32.f32 %v624
    %v629 = vsel %vm93, %v627, 0
    %631 = vmatprep.subr.mxu0 0.0
    %632 = vmatpush1.msra.mxu0 %v625
    %633 = vmatprep.subr.mxu0 0.0
    %634 = vmatpush1.msra.mxu0 %v626
    %635 = vmatprep.subr.mxu0 0.0
    %636 = vmatpush1.msra.mxu0 %v629
    %637 = vmatprep.subr.mxu0 0.0
    %638 = vmatpush1.msra.mxu0 0.0
    %639 = vmatprep.subr.mxu0 0.0
    %640 = vmatpush1.msra.mxu0 0.0
    %641 = vmatprep.subr.mxu0 0.0
    %642 = vmatpush1.msra.mxu0 0.0
    %643 = vmatprep.subr.mxu0 0.0
    %644 = vmatpush1.msra.mxu0 0.0
    %645 = vmatprep.subr.mxu0 0.0
    %646 = vmatpush1.msra.mxu0 0.0
    %647 = vmatprep.subr.mxu0 0.0
    %648 = vmatpush1.msra.mxu0 0.0
    %649 = vmatprep.subr.mxu0 0.0
    %650 = vmatpush1.msra.mxu0 0.0
    %651 = vmatprep.subr.mxu0 0.0
    %652 = vmatpush1.msra.mxu0 0.0
    %653 = vmatprep.subr.mxu0 0.0
    %654 = vmatpush1.msra.mxu0 0.0
    %655 = vmatprep.subr.mxu0 0.0
    %656 = vmatpush1.msra.mxu0 0.0
    %657 = vmatprep.subr.mxu0 0.0
    %658 = vmatpush1.msra.mxu0 0.0
    %659 = vmatprep.subr.mxu0 0.0
    %660 = vmatpush1.msra.mxu0 0.0
    %661 = vmatprep.subr.mxu0 0.0
    %662 = vmatpush1.msra.mxu0 0.0
    %663 = vmatprep.subr.mxu0 0.0
    %664 = vmatpush1.msra.mxu0 0.0
    %665 = vmatprep.subr.mxu0 0.0
    %666 = vmatpush1.msra.mxu0 0.0
    %667 = vmatprep.subr.mxu0 0.0
    %668 = vmatpush1.msra.mxu0 0.0
    %669 = vmatprep.subr.mxu0 0.0
    %670 = vmatpush1.msra.mxu0 0.0
    %671 = vmatprep.subr.mxu0 0.0
    %672 = vmatpush1.msra.mxu0 0.0
    %673 = vmatprep.subr.mxu0 0.0
    %674 = vmatpush1.msra.mxu0 0.0
    %675 = vmatprep.subr.mxu0 0.0
    %676 = vmatpush1.msra.mxu0 0.0
    %677 = vmatprep.subr.mxu0 0.0
    %678 = vmatpush1.msra.mxu0 0.0
    %679 = vmatprep.subr.mxu0 0.0
    %680 = vmatpush1.msra.mxu0 0.0
    %681 = vmatprep.subr.mxu0 0.0
    %682 = vmatpush1.msra.mxu0 0.0
    %683 = vmatprep.subr.mxu0 0.0
    %684 = vmatpush1.msra.mxu0 0.0
    %685 = vmatprep.subr.mxu0 0.0
    %686 = vmatpush1.msra.mxu0 0.0
    %687 = vmatprep.subr.mxu0 0.0
    %688 = vmatpush1.msra.mxu0 0.0
    %689 = vmatprep.subr.mxu0 0.0
    %690 = vmatpush1.msra.mxu0 0.0
    %691 = vmatprep.subr.mxu0 0.0
    %692 = vmatpush1.msra.mxu0 0.0
    %693 = vmatprep.subr.mxu0 0.0
    %694 = vmatpush1.msra.mxu0 0.0
    %695 = vmatprep.mubr.f32.mxu0 0.0
    %696 = vmatmul.mubr.f32.gmra.mrb[0].mxu0 %v82
    %v697 = vpop.f32.mrb[0].mxu0
    %v698 = vadd.f32 %v63, %v697
    %v699 = vpop.f32.mrb[0].mxu0
    %700 = vmatprep.mubr.f32.mxu0 0.0
    %701 = vmatmul.mubr.f32.gmra.mrb[0].mxu0 %v85
    %v702 = vpop.f32.mrb[0].mxu0
    %v703 = vadd.f32 %v68, %v702
    %v704 = vpop.f32.mrb[0].mxu0
    %705 = vmatprep.mubr.f32.mxu0 0.0
    %706 = vmatmul.mubr.f32.gmra.mrb[0].mxu0 %v88
    %v707 = vpop.f32.mrb[0].mxu0
    %v708 = vadd.f32 %v73, %v707
    %v709 = vpop.f32.mrb[0].mxu0
    %710 = vmatprep.mubr.f32.mxu0 0.0
    %711 = vmatmul.mubr.f32.gmra.mrb[0].mxu0 %v91
    %v712 = vpop.f32.mrb[0].mxu0
    %v713 = vadd.f32 %v78, %v712
    %v714 = vpop.f32.mrb[0].mxu0
    %715 = vdwg.mxu0
    %s716 = scalar_lea.vmem [#allocation2], 160
    %717 = vst [vmem:[%s716] sm:$0xff] %v698
    %718 = vst [vmem:[%s716 + $0x8] sm:$0xff] %v703
    %719 = vst [vmem:[%s716 + $0x10] sm:$0xff] %v708
    %720 = vst [vmem:[%s716 + $0x18] sm:$0xff] %v713
    %v721 = vld [vmem:[%s0 + $0x6] sm:$0x1]
    %v722 = vlaneseq
    %v723 = vshrl.u32 %v722, 7
    %v724 = vsub.s32 0, %v723
    %v725 = vrot.slane %v721, %v724
    %vm726 = vcmp.eq.s32.totalorder %v43, %v725
    %vm727 = vcmp.eq.s32.totalorder %v44, %v725
    %vm728 = vcmp.eq.s32.totalorder %v45, %v725
    %v729 = vsel %vm726, 1, 0
    %v730 = vsel %vm727, 1, 0
    %v731 = vsel %vm728, 1, 0
    %v732 = vcvt.s32.f32 %v729
    %v733 = vcvt.s32.f32 %v730
    %v734 = vcvt.s32.f32 %v731
    %v736 = vsel %vm93, %v734, 0
    %738 = vmatprep.subr.mxu0 0.0
    %739 = vmatpush1.msra.mxu0 %v732
    %740 = vmatprep.subr.mxu0 0.0
    %741 = vmatpush1.msra.mxu0 %v733
    %742 = vmatprep.subr.mxu0 0.0
    %743 = vmatpush1.msra.mxu0 %v736
    %744 = vmatprep.subr.mxu0 0.0
    %745 = vmatpush1.msra.mxu0 0.0
    %746 = vmatprep.subr.mxu0 0.0
    %747 = vmatpush1.msra.mxu0 0.0
    %748 = vmatprep.subr.mxu0 0.0
    %749 = vmatpush1.msra.mxu0 0.0
    %750 = vmatprep.subr.mxu0 0.0
    %751 = vmatpush1.msra.mxu0 0.0
    %752 = vmatprep.subr.mxu0 0.0
    %753 = vmatpush1.msra.mxu0 0.0
    %754 = vmatprep.subr.mxu0 0.0
    %755 = vmatpush1.msra.mxu0 0.0
    %756 = vmatprep.subr.mxu0 0.0
    %757 = vmatpush1.msra.mxu0 0.0
    %758 = vmatprep.subr.mxu0 0.0
    %759 = vmatpush1.msra.mxu0 0.0
    %760 = vmatprep.subr.mxu0 0.0
    %761 = vmatpush1.msra.mxu0 0.0
    %762 = vmatprep.subr.mxu0 0.0
    %763 = vmatpush1.msra.mxu0 0.0
    %764 = vmatprep.subr.mxu0 0.0
    %765 = vmatpush1.msra.mxu0 0.0
    %766 = vmatprep.subr.mxu0 0.0
    %767 = vmatpush1.msra.mxu0 0.0
    %768 = vmatprep.subr.mxu0 0.0
    %769 = vmatpush1.msra.mxu0 0.0
    %770 = vmatprep.subr.mxu0 0.0
    %771 = vmatpush1.msra.mxu0 0.0
    %772 = vmatprep.subr.mxu0 0.0
    %773 = vmatpush1.msra.mxu0 0.0
    %774 = vmatprep.subr.mxu0 0.0
    %775 = vmatpush1.msra.mxu0 0.0
    %776 = vmatprep.subr.mxu0 0.0
    %777 = vmatpush1.msra.mxu0 0.0
    %778 = vmatprep.subr.mxu0 0.0
    %779 = vmatpush1.msra.mxu0 0.0
    %780 = vmatprep.subr.mxu0 0.0
    %781 = vmatpush1.msra.mxu0 0.0
    %782 = vmatprep.subr.mxu0 0.0
    %783 = vmatpush1.msra.mxu0 0.0
    %784 = vmatprep.subr.mxu0 0.0
    %785 = vmatpush1.msra.mxu0 0.0
    %786 = vmatprep.subr.mxu0 0.0
    %787 = vmatpush1.msra.mxu0 0.0
    %788 = vmatprep.subr.mxu0 0.0
    %789 = vmatpush1.msra.mxu0 0.0
    %790 = vmatprep.subr.mxu0 0.0
    %791 = vmatpush1.msra.mxu0 0.0
    %792 = vmatprep.subr.mxu0 0.0
    %793 = vmatpush1.msra.mxu0 0.0
    %794 = vmatprep.subr.mxu0 0.0
    %795 = vmatpush1.msra.mxu0 0.0
    %796 = vmatprep.subr.mxu0 0.0
    %797 = vmatpush1.msra.mxu0 0.0
    %798 = vmatprep.subr.mxu0 0.0
    %799 = vmatpush1.msra.mxu0 0.0
    %800 = vmatprep.subr.mxu0 0.0
    %801 = vmatpush1.msra.mxu0 0.0
    %802 = vmatprep.mubr.f32.mxu0 0.0
    %803 = vmatmul.mubr.f32.gmra.mrb[0].mxu0 %v82
    %v804 = vpop.f32.mrb[0].mxu0
    %v805 = vadd.f32 %v63, %v804
    %v806 = vpop.f32.mrb[0].mxu0
    %807 = vmatprep.mubr.f32.mxu0 0.0
    %808 = vmatmul.mubr.f32.gmra.mrb[0].mxu0 %v85
    %v809 = vpop.f32.mrb[0].mxu0
    %v810 = vadd.f32 %v68, %v809
    %v811 = vpop.f32.mrb[0].mxu0
    %812 = vmatprep.mubr.f32.mxu0 0.0
    %813 = vmatmul.mubr.f32.gmra.mrb[0].mxu0 %v88
    %v814 = vpop.f32.mrb[0].mxu0
    %v815 = vadd.f32 %v73, %v814
    %v816 = vpop.f32.mrb[0].mxu0
    %817 = vmatprep.mubr.f32.mxu0 0.0
    %818 = vmatmul.mubr.f32.gmra.mrb[0].mxu0 %v91
    %v819 = vpop.f32.mrb[0].mxu0
    %v820 = vadd.f32 %v78, %v819
    %v821 = vpop.f32.mrb[0].mxu0
    %822 = vdwg.mxu0
    %s823 = scalar_lea.vmem [#allocation2], 192
    %824 = vst [vmem:[%s823] sm:$0xff] %v805
    %825 = vst [vmem:[%s823 + $0x8] sm:$0xff] %v810
    %826 = vst [vmem:[%s823 + $0x10] sm:$0xff] %v815
    %827 = vst [vmem:[%s823 + $0x18] sm:$0xff] %v820
    %v828 = vld [vmem:[%s0 + $0x7] sm:$0x1]
    %v829 = vlaneseq
    %v830 = vshrl.u32 %v829, 7
    %v831 = vsub.s32 0, %v830
    %v832 = vrot.slane %v828, %v831
    %vm833 = vcmp.eq.s32.totalorder %v43, %v832
    %vm834 = vcmp.eq.s32.totalorder %v44, %v832
    %vm835 = vcmp.eq.s32.totalorder %v45, %v832
    %v836 = vsel %vm833, 1, 0
    %v837 = vsel %vm834, 1, 0
    %v838 = vsel %vm835, 1, 0
    %v839 = vcvt.s32.f32 %v836
    %v840 = vcvt.s32.f32 %v837
    %v841 = vcvt.s32.f32 %v838
    %v843 = vsel %vm93, %v841, 0
    %845 = vmatprep.subr.mxu0 0.0
    %846 = vmatpush1.msra.mxu0 %v839
    %847 = vmatprep.subr.mxu0 0.0
    %848 = vmatpush1.msra.mxu0 %v840
    %849 = vmatprep.subr.mxu0 0.0
    %850 = vmatpush1.msra.mxu0 %v843
    %851 = vmatprep.subr.mxu0 0.0
    %852 = vmatpush1.msra.mxu0 0.0
    %853 = vmatprep.subr.mxu0 0.0
    %854 = vmatpush1.msra.mxu0 0.0
    %855 = vmatprep.subr.mxu0 0.0
    %856 = vmatpush1.msra.mxu0 0.0
    %857 = vmatprep.subr.mxu0 0.0
    %858 = vmatpush1.msra.mxu0 0.0
    %859 = vmatprep.subr.mxu0 0.0
    %860 = vmatpush1.msra.mxu0 0.0
    %861 = vmatprep.subr.mxu0 0.0
    %862 = vmatpush1.msra.mxu0 0.0
    %863 = vmatprep.subr.mxu0 0.0
    %864 = vmatpush1.msra.mxu0 0.0
    %865 = vmatprep.subr.mxu0 0.0
    %866 = vmatpush1.msra.mxu0 0.0
    %867 = vmatprep.subr.mxu0 0.0
    %868 = vmatpush1.msra.mxu0 0.0
    %869 = vmatprep.subr.mxu0 0.0
    %870 = vmatpush1.msra.mxu0 0.0
    %871 = vmatprep.subr.mxu0 0.0
    %872 = vmatpush1.msra.mxu0 0.0
    %873 = vmatprep.subr.mxu0 0.0
    %874 = vmatpush1.msra.mxu0 0.0
    %875 = vmatprep.subr.mxu0 0.0
    %876 = vmatpush1.msra.mxu0 0.0
    %877 = vmatprep.subr.mxu0 0.0
    %878 = vmatpush1.msra.mxu0 0.0
    %879 = vmatprep.subr.mxu0 0.0
    %880 = vmatpush1.msra.mxu0 0.0
    %881 = vmatprep.subr.mxu0 0.0
    %882 = vmatpush1.msra.mxu0 0.0
    %883 = vmatprep.subr.mxu0 0.0
    %884 = vmatpush1.msra.mxu0 0.0
    %885 = vmatprep.subr.mxu0 0.0
    %886 = vmatpush1.msra.mxu0 0.0
    %887 = vmatprep.subr.mxu0 0.0
    %888 = vmatpush1.msra.mxu0 0.0
    %889 = vmatprep.subr.mxu0 0.0
    %890 = vmatpush1.msra.mxu0 0.0
    %891 = vmatprep.subr.mxu0 0.0
    %892 = vmatpush1.msra.mxu0 0.0
    %893 = vmatprep.subr.mxu0 0.0
    %894 = vmatpush1.msra.mxu0 0.0
    %895 = vmatprep.subr.mxu0 0.0
    %896 = vmatpush1.msra.mxu0 0.0
    %897 = vmatprep.subr.mxu0 0.0
    %898 = vmatpush1.msra.mxu0 0.0
    %899 = vmatprep.subr.mxu0 0.0
    %900 = vmatpush1.msra.mxu0 0.0
    %901 = vmatprep.subr.mxu0 0.0
    %902 = vmatpush1.msra.mxu0 0.0
    %903 = vmatprep.subr.mxu0 0.0
    %904 = vmatpush1.msra.mxu0 0.0
    %905 = vmatprep.subr.mxu0 0.0
    %906 = vmatpush1.msra.mxu0 0.0
    %907 = vmatprep.subr.mxu0 0.0
    %908 = vmatpush1.msra.mxu0 0.0
    %909 = vmatprep.mubr.f32.mxu0 0.0
    %910 = vmatmul.mubr.f32.gmra.mrb[0].mxu0 %v82
    %v911 = vpop.f32.mrb[0].mxu0
    %v912 = vadd.f32 %v63, %v911
    %v913 = vpop.f32.mrb[0].mxu0
    %914 = vmatprep.mubr.f32.mxu0 0.0
    %915 = vmatmul.mubr.f32.gmra.mrb[0].mxu0 %v85
    %v916 = vpop.f32.mrb[0].mxu0
    %v917 = vadd.f32 %v68, %v916
    %v918 = vpop.f32.mrb[0].mxu0
    %919 = vmatprep.mubr.f32.mxu0 0.0
    %920 = vmatmul.mubr.f32.gmra.mrb[0].mxu0 %v88
    %v921 = vpop.f32.mrb[0].mxu0
    %v922 = vadd.f32 %v73, %v921
    %v923 = vpop.f32.mrb[0].mxu0
    %924 = vmatprep.mubr.f32.mxu0 0.0
    %925 = vmatmul.mubr.f32.gmra.mrb[0].mxu0 %v91
    %v926 = vpop.f32.mrb[0].mxu0
    %v927 = vadd.f32 %v78, %v926
    %v928 = vpop.f32.mrb[0].mxu0
    %929 = vdwg.mxu0
    %s930 = scalar_lea.vmem [#allocation2], 224
    %931 = vst [vmem:[%s930] sm:$0xff] %v912
    %932 = vst [vmem:[%s930 + $0x8] sm:$0xff] %v917
    %933 = vst [vmem:[%s930 + $0x10] sm:$0xff] %v922
    %934 = vst [vmem:[%s930 + $0x18] sm:$0xff] %v927
    %v935 = vld [vmem:[#allocation2] sm:$0xff]
    %v936 = vld [vmem:[#allocation2 + $0x8] sm:$0xff]
    %v937 = vld [vmem:[#allocation2 + $0x10] sm:$0xff]
    %v938 = vld [vmem:[#allocation2 + $0x18] sm:$0xff]
    %vm939 = vcmask 261120
    %v941 = vsel %vm939, %v33, 0
    %v944 = vsel %vm939, %v34, 0
    %v947 = vsel %vm939, %v35, 0
    %v950 = vsel %vm939, %v36, 0
    %952 = vmatprep.subr.mxu0 0.0
    %953 = vmatpush1.msra.mxu0 0.0
    %954 = vmatprep.subr.mxu0 0.0
    %955 = vmatpush1.msra.mxu0 0.0
    %956 = vmatprep.subr.mxu0 0.0
    %957 = vmatpush1.msra.mxu0 0.0
    %958 = vmatprep.subr.mxu0 0.0
    %959 = vmatpush1.msra.mxu0 0.0
    %960 = vmatprep.subr.mxu0 0.0
    %961 = vmatpush1.msra.mxu0 0.0
    %962 = vmatprep.subr.mxu0 0.0
    %963 = vmatpush1.msra.mxu0 0.0
    %964 = vmatprep.subr.mxu0 0.0
    %965 = vmatpush1.msra.mxu0 0.0
    %966 = vmatprep.subr.mxu0 0.0
    %967 = vmatpush1.msra.mxu0 0.0
    %968 = vmatprep.subr.mxu0 0.0
    %969 = vmatpush1.msra.mxu0 0.0
    %970 = vmatprep.subr.mxu0 0.0
    %971 = vmatpush1.msra.mxu0 0.0
    %972 = vmatprep.subr.mxu0 0.0
    %973 = vmatpush1.msra.mxu0 0.0
    %974 = vmatprep.subr.mxu0 0.0
    %975 = vmatpush1.msra.mxu0 0.0
    %976 = vmatprep.subr.mxu0 0.0
    %977 = vmatpush1.msra.mxu0 0.0
    %978 = vmatprep.subr.mxu0 0.0
    %979 = vmatpush1.msra.mxu0 0.0
    %980 = vmatprep.subr.mxu0 0.0
    %981 = vmatpush1.msra.mxu0 0.0
    %982 = vmatprep.subr.mxu0 0.0
    %983 = vmatpush1.msra.mxu0 0.0
    %984 = vmatprep.subr.mxu0 0.0
    %985 = vmatpush1.msra.mxu0 0.0
    %986 = vmatprep.subr.mxu0 0.0
    %987 = vmatpush1.msra.mxu0 0.0
    %988 = vmatprep.subr.mxu0 0.0
    %989 = vmatpush1.msra.mxu0 0.0
    %990 = vmatprep.subr.mxu0 0.0
    %991 = vmatpush1.msra.mxu0 0.0
    %992 = vmatprep.subr.mxu0 0.0
    %993 = vmatpush1.msra.mxu0 0.0
    %994 = vmatprep.subr.mxu0 0.0
    %995 = vmatpush1.msra.mxu0 0.0
    %996 = vmatprep.subr.mxu0 0.0
    %997 = vmatpush1.msra.mxu0 0.0
    %998 = vmatprep.subr.mxu0 0.0
    %999 = vmatpush1.msra.mxu0 0.0
    %1000 = vmatprep.subr.mxu0 0.0
    %1001 = vmatpush1.msra.mxu0 0.0
    %1002 = vmatprep.subr.mxu0 0.0
    %1003 = vmatpush1.msra.mxu0 0.0
    %1004 = vmatprep.subr.mxu0 0.0
    %1005 = vmatpush1.msra.mxu0 0.0
    %1006 = vmatprep.subr.mxu0 0.0
    %1007 = vmatpush1.msra.mxu0 0.0
    %1008 = vmatprep.subr.mxu0 0.0
    %1009 = vmatpush1.msra.mxu0 0.0
    %1010 = vmatprep.subr.mxu0 0.0
    %1011 = vmatpush1.msra.mxu0 0.0
    %1012 = vmatprep.subr.mxu0 0.0
    %1013 = vmatpush1.msra.mxu0 0.0
    %1014 = vmatprep.subr.mxu0 0.0
    %1015 = vmatpush1.msra.mxu0 0.0
    %1016 = vmatprep.mubr.f32.mxu0 0.0
    %1017 = vmatmul.mubr.f32.gmra.mrb[0].mxu0 %v941
    %v1018 = vpop.f32.mrb[0].mxu0
    %v1019 = vadd.f32 0.0, %v1018
    %v1020 = vpop.f32.mrb[0].mxu0
    %1021 = vmatprep.mubr.f32.mxu0 0.0
    %1022 = vmatmul.mubr.f32.gmra.mrb[0].mxu0 %v944
    %v1023 = vpop.f32.mrb[0].mxu0
    %v1024 = vadd.f32 0.0, %v1023
    %v1025 = vpop.f32.mrb[0].mxu0
    %1026 = vmatprep.mubr.f32.mxu0 0.0
    %1027 = vmatmul.mubr.f32.gmra.mrb[0].mxu0 %v947
    %v1028 = vpop.f32.mrb[0].mxu0
    %v1029 = vadd.f32 0.0, %v1028
    %v1030 = vpop.f32.mrb[0].mxu0
    %1031 = vmatprep.mubr.f32.mxu0 0.0
    %1032 = vmatmul.mubr.f32.gmra.mrb[0].mxu0 %v950
    %v1033 = vpop.f32.mrb[0].mxu0
    %v1034 = vadd.f32 0.0, %v1033
    %v1035 = vpop.f32.mrb[0].mxu0
    %1036 = vdwg.mxu0
    %v1037 = vadd.f32 %v935, %v1019
    %v1038 = vadd.f32 %v936, %v1024
    %v1039 = vadd.f32 %v937, %v1029
    %v1040 = vadd.f32 %v938, %v1034
    %v1041 = vtanh.pop %v1037
    %v1042 = vtanh.pop %v1038
    %v1043 = vtanh.pop %v1039
    %v1044 = vtanh.pop %v1040
    %vm1045 = vcmp.gt.s32.totalorder %v41, 0
    %v1046 = vsel %vm1045, 1, 0
    %v1047 = vlaneseq
    %v1048 = vshrl.u32 %v1047, 7
    %v1049 = vsub.s32 0, %v1048
    %v1050 = vrot.slane %v1046, %v1049
    %vm1051 = vcmp.eq.s32.totalorder %v1050, 1
    %v1052 = vsel %vm1051, %v1041, 0.0
    %v1053 = vsel %vm1051, %v1042, 0.0
    %v1054 = vsel %vm1051, %v1043, 0.0
    %v1055 = vsel %vm1051, %v1044, 0.0
    %v1056 = vld [vmem:[%s288] sm:$0xff]
    %v1057 = vld [vmem:[%s288 + $0x8] sm:$0xff]
    %v1058 = vld [vmem:[%s288 + $0x10] sm:$0xff]
    %v1059 = vld [vmem:[%s288 + $0x18] sm:$0xff]
    %1060 = vmatprep.subr.mxu0 0.0
    %1061 = vmatpush1.msra.mxu0 %v1052
    %1062 = vmatprep.subr.mxu0 0.0
    %1063 = vmatpush1.msra.mxu0 %v1053
    %1064 = vmatprep.subr.mxu0 0.0
    %1065 = vmatpush1.msra.mxu0 %v1054
    %1066 = vmatprep.subr.mxu0 0.0
    %1067 = vmatpush1.msra.mxu0 %v1055
    %1068 = vmatprep.subr.mxu0 0.0
    %1069 = vmatpush1.msra.mxu0 0.0
    %1070 = vmatprep.subr.mxu0 0.0
    %1071 = vmatpush1.msra.mxu0 0.0
    %1072 = vmatprep.subr.mxu0 0.0
    %1073 = vmatpush1.msra.mxu0 0.0
    %1074 = vmatprep.subr.mxu0 0.0
    %1075 = vmatpush1.msra.mxu0 0.0
    %1076 = vmatprep.subr.mxu0 0.0
    %1077 = vmatpush1.msra.mxu0 0.0
    %1078 = vmatprep.subr.mxu0 0.0
    %1079 = vmatpush1.msra.mxu0 0.0
    %1080 = vmatprep.subr.mxu0 0.0
    %1081 = vmatpush1.msra.mxu0 0.0
    %1082 = vmatprep.subr.mxu0 0.0
    %1083 = vmatpush1.msra.mxu0 0.0
    %1084 = vmatprep.subr.mxu0 0.0
    %1085 = vmatpush1.msra.mxu0 0.0
    %1086 = vmatprep.subr.mxu0 0.0
    %1087 = vmatpush1.msra.mxu0 0.0
    %1088 = vmatprep.subr.mxu0 0.0
    %1089 = vmatpush1.msra.mxu0 0.0
    %1090 = vmatprep.subr.mxu0 0.0
    %1091 = vmatpush1.msra.mxu0 0.0
    %1092 = vmatprep.subr.mxu0 0.0
    %1093 = vmatpush1.msra.mxu0 0.0
    %1094 = vmatprep.subr.mxu0 0.0
    %1095 = vmatpush1.msra.mxu0 0.0
    %1096 = vmatprep.subr.mxu0 0.0
    %1097 = vmatpush1.msra.mxu0 0.0
    %1098 = vmatprep.subr.mxu0 0.0
    %1099 = vmatpush1.msra.mxu0 0.0
    %1100 = vmatprep.subr.mxu0 0.0
    %1101 = vmatpush1.msra.mxu0 0.0
    %1102 = vmatprep.subr.mxu0 0.0
    %1103 = vmatpush1.msra.mxu0 0.0
    %1104 = vmatprep.subr.mxu0 0.0
    %1105 = vmatpush1.msra.mxu0 0.0
    %1106 = vmatprep.subr.mxu0 0.0
    %1107 = vmatpush1.msra.mxu0 0.0
    %1108 = vmatprep.subr.mxu0 0.0
    %1109 = vmatpush1.msra.mxu0 0.0
    %1110 = vmatprep.subr.mxu0 0.0
    %1111 = vmatpush1.msra.mxu0 0.0
    %1112 = vmatprep.subr.mxu0 0.0
    %1113 = vmatpush1.msra.mxu0 0.0
    %1114 = vmatprep.subr.mxu0 0.0
    %1115 = vmatpush1.msra.mxu0 0.0
    %1116 = vmatprep.subr.mxu0 0.0
    %1117 = vmatpush1.msra.mxu0 0.0
    %1118 = vmatprep.subr.mxu0 0.0
    %1119 = vmatpush1.msra.mxu0 0.0
    %1120 = vmatprep.subr.mxu0 0.0
    %1121 = vmatpush1.msra.mxu0 0.0
    %1122 = vmatprep.subr.mxu0 0.0
    %1123 = vmatpush1.msra.mxu0 0.0
    %1124 = vmatprep.mubr.f32.mxu0 0.0
    %1125 = vmatmul.mubr.f32.gmra.mrb[0].mxu0 %v941
    %v1126 = vpop.f32.mrb[0].mxu0
    %v1127 = vadd.f32 0.0, %v1126
    %v1128 = vpop.f32.mrb[0].mxu0
    %1129 = vmatprep.mubr.f32.mxu0 0.0
    %1130 = vmatmul.mubr.f32.gmra.mrb[0].mxu0 %v944
    %v1131 = vpop.f32.mrb[0].mxu0
    %v1132 = vadd.f32 0.0, %v1131
    %v1133 = vpop.f32.mrb[0].mxu0
    %1134 = vmatprep.mubr.f32.mxu0 0.0
    %1135 = vmatmul.mubr.f32.gmra.mrb[0].mxu0 %v947
    %v1136 = vpop.f32.mrb[0].mxu0
    %v1137 = vadd.f32 0.0, %v1136
    %v1138 = vpop.f32.mrb[0].mxu0
    %1139 = vmatprep.mubr.f32.mxu0 0.0
    %1140 = vmatmul.mubr.f32.gmra.mrb[0].mxu0 %v950
    %v1141 = vpop.f32.mrb[0].mxu0
    %v1142 = vadd.f32 0.0, %v1141
    %v1143 = vpop.f32.mrb[0].mxu0
    %1144 = vdwg.mxu0
    %v1145 = vadd.f32 %v1056, %v1127
    %v1146 = vadd.f32 %v1057, %v1132
    %v1147 = vadd.f32 %v1058, %v1137
    %v1148 = vadd.f32 %v1059, %v1142
    %v1149 = vtanh.pop %v1145
    %v1150 = vtanh.pop %v1146
    %v1151 = vtanh.pop %v1147
    %v1152 = vtanh.pop %v1148
    %vm1153 = vcmp.gt.s32.totalorder %v41, 1
    %v1154 = vsel %vm1153, 1, 0
    %v1155 = vlaneseq
    %v1156 = vshrl.u32 %v1155, 7
    %v1157 = vsub.s32 0, %v1156
    %v1158 = vrot.slane %v1154, %v1157
    %vm1159 = vcmp.eq.s32.totalorder %v1158, 1
    %v1160 = vsel %vm1159, %v1149, %v1052
    %v1161 = vsel %vm1159, %v1150, %v1053
    %v1162 = vsel %vm1159, %v1151, %v1054
    %v1163 = vsel %vm1159, %v1152, %v1055
    %v1164 = vld [vmem:[%s395] sm:$0xff]
    %v1165 = vld [vmem:[%s395 + $0x8] sm:$0xff]
    %v1166 = vld [vmem:[%s395 + $0x10] sm:$0xff]
    %v1167 = vld [vmem:[%s395 + $0x18] sm:$0xff]
    %1168 = vmatprep.subr.mxu0 0.0
    %1169 = vmatpush1.msra.mxu0 %v1160
    %1170 = vmatprep.subr.mxu0 0.0
    %1171 = vmatpush1.msra.mxu0 %v1161
    %1172 = vmatprep.subr.mxu0 0.0
    %1173 = vmatpush1.msra.mxu0 %v1162
    %1174 = vmatprep.subr.mxu0 0.0
    %1175 = vmatpush1.msra.mxu0 %v1163
    %1176 = vmatprep.subr.mxu0 0.0
    %1177 = vmatpush1.msra.mxu0 0.0
    %1178 = vmatprep.subr.mxu0 0.0
    %1179 = vmatpush1.msra.mxu0 0.0
    %1180 = vmatprep.subr.mxu0 0.0
    %1181 = vmatpush1.msra.mxu0 0.0
    %1182 = vmatprep.subr.mxu0 0.0
    %1183 = vmatpush1.msra.mxu0 0.0
    %1184 = vmatprep.subr.mxu0 0.0
    %1185 = vmatpush1.msra.mxu0 0.0
    %1186 = vmatprep.subr.mxu0 0.0
    %1187 = vmatpush1.msra.mxu0 0.0
    %1188 = vmatprep.subr.mxu0 0.0
    %1189 = vmatpush1.msra.mxu0 0.0
    %1190 = vmatprep.subr.mxu0 0.0
    %1191 = vmatpush1.msra.mxu0 0.0
    %1192 = vmatprep.subr.mxu0 0.0
    %1193 = vmatpush1.msra.mxu0 0.0
    %1194 = vmatprep.subr.mxu0 0.0
    %1195 = vmatpush1.msra.mxu0 0.0
    %1196 = vmatprep.subr.mxu0 0.0
    %1197 = vmatpush1.msra.mxu0 0.0
    %1198 = vmatprep.subr.mxu0 0.0
    %1199 = vmatpush1.msra.mxu0 0.0
    %1200 = vmatprep.subr.mxu0 0.0
    %1201 = vmatpush1.msra.mxu0 0.0
    %1202 = vmatprep.subr.mxu0 0.0
    %1203 = vmatpush1.msra.mxu0 0.0
    %1204 = vmatprep.subr.mxu0 0.0
    %1205 = vmatpush1.msra.mxu0 0.0
    %1206 = vmatprep.subr.mxu0 0.0
    %1207 = vmatpush1.msra.mxu0 0.0
    %1208 = vmatprep.subr.mxu0 0.0
    %1209 = vmatpush1.msra.mxu0 0.0
    %1210 = vmatprep.subr.mxu0 0.0
    %1211 = vmatpush1.msra.mxu0 0.0
    %1212 = vmatprep.subr.mxu0 0.0
    %1213 = vmatpush1.msra.mxu0 0.0
    %1214 = vmatprep.subr.mxu0 0.0
    %1215 = vmatpush1.msra.mxu0 0.0
    %1216 = vmatprep.subr.mxu0 0.0
    %1217 = vmatpush1.msra.mxu0 0.0
    %1218 = vmatprep.subr.mxu0 0.0
    %1219 = vmatpush1.msra.mxu0 0.0
    %1220 = vmatprep.subr.mxu0 0.0
    %1221 = vmatpush1.msra.mxu0 0.0
    %1222 = vmatprep.subr.mxu0 0.0
    %1223 = vmatpush1.msra.mxu0 0.0
    %1224 = vmatprep.subr.mxu0 0.0
    %1225 = vmatpush1.msra.mxu0 0.0
    %1226 = vmatprep.subr.mxu0 0.0
    %1227 = vmatpush1.msra.mxu0 0.0
    %1228 = vmatprep.subr.mxu0 0.0
    %1229 = vmatpush1.msra.mxu0 0.0
    %1230 = vmatprep.subr.mxu0 0.0
    %1231 = vmatpush1.msra.mxu0 0.0
    %1232 = vmatprep.mubr.f32.mxu0 0.0
    %1233 = vmatmul.mubr.f32.gmra.mrb[0].mxu0 %v941
    %v1234 = vpop.f32.mrb[0].mxu0
    %v1235 = vadd.f32 0.0, %v1234
    %v1236 = vpop.f32.mrb[0].mxu0
    %1237 = vmatprep.mubr.f32.mxu0 0.0
    %1238 = vmatmul.mubr.f32.gmra.mrb[0].mxu0 %v944
    %v1239 = vpop.f32.mrb[0].mxu0
    %v1240 = vadd.f32 0.0, %v1239
    %v1241 = vpop.f32.mrb[0].mxu0
    %1242 = vmatprep.mubr.f32.mxu0 0.0
    %1243 = vmatmul.mubr.f32.gmra.mrb[0].mxu0 %v947
    %v1244 = vpop.f32.mrb[0].mxu0
    %v1245 = vadd.f32 0.0, %v1244
    %v1246 = vpop.f32.mrb[0].mxu0
    %1247 = vmatprep.mubr.f32.mxu0 0.0
    %1248 = vmatmul.mubr.f32.gmra.mrb[0].mxu0 %v950
    %v1249 = vpop.f32.mrb[0].mxu0
    %v1250 = vadd.f32 0.0, %v1249
    %v1251 = vpop.f32.mrb[0].mxu0
    %1252 = vdwg.mxu0
    %v1253 = vadd.f32 %v1164, %v1235
    %v1254 = vadd.f32 %v1165, %v1240
    %v1255 = vadd.f32 %v1166, %v1245
    %v1256 = vadd.f32 %v1167, %v1250
    %v1257 = vtanh.pop %v1253
    %v1258 = vtanh.pop %v1254
    %v1259 = vtanh.pop %v1255
    %v1260 = vtanh.pop %v1256
    %vm1261 = vcmp.gt.s32.totalorder %v41, 2
    %v1262 = vsel %vm1261, 1, 0
    %v1263 = vlaneseq
    %v1264 = vshrl.u32 %v1263, 7
    %v1265 = vsub.s32 0, %v1264
    %v1266 = vrot.slane %v1262, %v1265
    %vm1267 = vcmp.eq.s32.totalorder %v1266, 1
    %v1268 = vsel %vm1267, %v1257, %v1160
    %v1269 = vsel %vm1267, %v1258, %v1161
    %v1270 = vsel %vm1267, %v1259, %v1162
    %v1271 = vsel %vm1267, %v1260, %v1163
    %v1272 = vld [vmem:[%s502] sm:$0xff]
    %v1273 = vld [vmem:[%s502 + $0x8] sm:$0xff]
    %v1274 = vld [vmem:[%s502 + $0x10] sm:$0xff]
    %v1275 = vld [vmem:[%s502 + $0x18] sm:$0xff]
    %1276 = vmatprep.subr.mxu0 0.0
    %1277 = vmatpush1.msra.mxu0 %v1268
    %1278 = vmatprep.subr.mxu0 0.0
    %1279 = vmatpush1.msra.mxu0 %v1269
    %1280 = vmatprep.subr.mxu0 0.0
    %1281 = vmatpush1.msra.mxu0 %v1270
    %1282 = vmatprep.subr.mxu0 0.0
    %1283 = vmatpush1.msra.mxu0 %v1271
    %1284 = vmatprep.subr.mxu0 0.0
    %1285 = vmatpush1.msra.mxu0 0.0
    %1286 = vmatprep.subr.mxu0 0.0
    %1287 = vmatpush1.msra.mxu0 0.0
    %1288 = vmatprep.subr.mxu0 0.0
    %1289 = vmatpush1.msra.mxu0 0.0
    %1290 = vmatprep.subr.mxu0 0.0
    %1291 = vmatpush1.msra.mxu0 0.0
    %1292 = vmatprep.subr.mxu0 0.0
    %1293 = vmatpush1.msra.mxu0 0.0
    %1294 = vmatprep.subr.mxu0 0.0
    %1295 = vmatpush1.msra.mxu0 0.0
    %1296 = vmatprep.subr.mxu0 0.0
    %1297 = vmatpush1.msra.mxu0 0.0
    %1298 = vmatprep.subr.mxu0 0.0
    %1299 = vmatpush1.msra.mxu0 0.0
    %1300 = vmatprep.subr.mxu0 0.0
    %1301 = vmatpush1.msra.mxu0 0.0
    %1302 = vmatprep.subr.mxu0 0.0
    %1303 = vmatpush1.msra.mxu0 0.0
    %1304 = vmatprep.subr.mxu0 0.0
    %1305 = vmatpush1.msra.mxu0 0.0
    %1306 = vmatprep.subr.mxu0 0.0
    %1307 = vmatpush1.msra.mxu0 0.0
    %1308 = vmatprep.subr.mxu0 0.0
    %1309 = vmatpush1.msra.mxu0 0.0
    %1310 = vmatprep.subr.mxu0 0.0
    %1311 = vmatpush1.msra.mxu0 0.0
    %1312 = vmatprep.subr.mxu0 0.0
    %1313 = vmatpush1.msra.mxu0 0.0
    %1314 = vmatprep.subr.mxu0 0.0
    %1315 = vmatpush1.msra.mxu0 0.0
    %1316 = vmatprep.subr.mxu0 0.0
    %1317 = vmatpush1.msra.mxu0 0.0
    %1318 = vmatprep.subr.mxu0 0.0
    %1319 = vmatpush1.msra.mxu0 0.0
    %1320 = vmatprep.subr.mxu0 0.0
    %1321 = vmatpush1.msra.mxu0 0.0
    %1322 = vmatprep.subr.mxu0 0.0
    %1323 = vmatpush1.msra.mxu0 0.0
    %1324 = vmatprep.subr.mxu0 0.0
    %1325 = vmatpush1.msra.mxu0 0.0
    %1326 = vmatprep.subr.mxu0 0.0
    %1327 = vmatpush1.msra.mxu0 0.0
    %1328 = vmatprep.subr.mxu0 0.0
    %1329 = vmatpush1.msra.mxu0 0.0
    %1330 = vmatprep.subr.mxu0 0.0
    %1331 = vmatpush1.msra.mxu0 0.0
    %1332 = vmatprep.subr.mxu0 0.0
    %1333 = vmatpush1.msra.mxu0 0.0
    %1334 = vmatprep.subr.mxu0 0.0
    %1335 = vmatpush1.msra.mxu0 0.0
    %1336 = vmatprep.subr.mxu0 0.0
    %1337 = vmatpush1.msra.mxu0 0.0
    %1338 = vmatprep.subr.mxu0 0.0
    %1339 = vmatpush1.msra.mxu0 0.0
    %1340 = vmatprep.mubr.f32.mxu0 0.0
    %1341 = vmatmul.mubr.f32.gmra.mrb[0].mxu0 %v941
    %v1342 = vpop.f32.mrb[0].mxu0
    %v1343 = vadd.f32 0.0, %v1342
    %v1344 = vpop.f32.mrb[0].mxu0
    %1345 = vmatprep.mubr.f32.mxu0 0.0
    %1346 = vmatmul.mubr.f32.gmra.mrb[0].mxu0 %v944
    %v1347 = vpop.f32.mrb[0].mxu0
    %v1348 = vadd.f32 0.0, %v1347
    %v1349 = vpop.f32.mrb[0].mxu0
    %1350 = vmatprep.mubr.f32.mxu0 0.0
    %1351 = vmatmul.mubr.f32.gmra.mrb[0].mxu0 %v947
    %v1352 = vpop.f32.mrb[0].mxu0
    %v1353 = vadd.f32 0.0, %v1352
    %v1354 = vpop.f32.mrb[0].mxu0
    %1355 = vmatprep.mubr.f32.mxu0 0.0
    %1356 = vmatmul.mubr.f32.gmra.mrb[0].mxu0 %v950
    %v1357 = vpop.f32.mrb[0].mxu0
    %v1358 = vadd.f32 0.0, %v1357
    %v1359 = vpop.f32.mrb[0].mxu0
    %1360 = vdwg.mxu0
    %v1361 = vadd.f32 %v1272, %v1343
    %v1362 = vadd.f32 %v1273, %v1348
    %v1363 = vadd.f32 %v1274, %v1353
    %v1364 = vadd.f32 %v1275, %v1358
    %v1365 = vtanh.pop %v1361
    %v1366 = vtanh.pop %v1362
    %v1367 = vtanh.pop %v1363
    %v1368 = vtanh.pop %v1364
    %vm1369 = vcmp.gt.s32.totalorder %v41, 3
    %v1370 = vsel %vm1369, 1, 0
    %v1371 = vlaneseq
    %v1372 = vshrl.u32 %v1371, 7
    %v1373 = vsub.s32 0, %v1372
    %v1374 = vrot.slane %v1370, %v1373
    %vm1375 = vcmp.eq.s32.totalorder %v1374, 1
    %v1376 = vsel %vm1375, %v1365, %v1268
    %v1377 = vsel %vm1375, %v1366, %v1269
    %v1378 = vsel %vm1375, %v1367, %v1270
    %v1379 = vsel %vm1375, %v1368, %v1271
    %v1380 = vld [vmem:[%s609] sm:$0xff]
    %v1381 = vld [vmem:[%s609 + $0x8] sm:$0xff]
    %v1382 = vld [vmem:[%s609 + $0x10] sm:$0xff]
    %v1383 = vld [vmem:[%s609 + $0x18] sm:$0xff]
    %1384 = vmatprep.subr.mxu0 0.0
    %1385 = vmatpush1.msra.mxu0 %v1376
    %1386 = vmatprep.subr.mxu0 0.0
    %1387 = vmatpush1.msra.mxu0 %v1377
    %1388 = vmatprep.subr.mxu0 0.0
    %1389 = vmatpush1.msra.mxu0 %v1378
    %1390 = vmatprep.subr.mxu0 0.0
    %1391 = vmatpush1.msra.mxu0 %v1379
    %1392 = vmatprep.subr.mxu0 0.0
    %1393 = vmatpush1.msra.mxu0 0.0
    %1394 = vmatprep.subr.mxu0 0.0
    %1395 = vmatpush1.msra.mxu0 0.0
    %1396 = vmatprep.subr.mxu0 0.0
    %1397 = vmatpush1.msra.mxu0 0.0
    %1398 = vmatprep.subr.mxu0 0.0
    %1399 = vmatpush1.msra.mxu0 0.0
    %1400 = vmatprep.subr.mxu0 0.0
    %1401 = vmatpush1.msra.mxu0 0.0
    %1402 = vmatprep.subr.mxu0 0.0
    %1403 = vmatpush1.msra.mxu0 0.0
    %1404 = vmatprep.subr.mxu0 0.0
    %1405 = vmatpush1.msra.mxu0 0.0
    %1406 = vmatprep.subr.mxu0 0.0
    %1407 = vmatpush1.msra.mxu0 0.0
    %1408 = vmatprep.subr.mxu0 0.0
    %1409 = vmatpush1.msra.mxu0 0.0
    %1410 = vmatprep.subr.mxu0 0.0
    %1411 = vmatpush1.msra.mxu0 0.0
    %1412 = vmatprep.subr.mxu0 0.0
    %1413 = vmatpush1.msra.mxu0 0.0
    %1414 = vmatprep.subr.mxu0 0.0
    %1415 = vmatpush1.msra.mxu0 0.0
    %1416 = vmatprep.subr.mxu0 0.0
    %1417 = vmatpush1.msra.mxu0 0.0
    %1418 = vmatprep.subr.mxu0 0.0
    %1419 = vmatpush1.msra.mxu0 0.0
    %1420 = vmatprep.subr.mxu0 0.0
    %1421 = vmatpush1.msra.mxu0 0.0
    %1422 = vmatprep.subr.mxu0 0.0
    %1423 = vmatpush1.msra.mxu0 0.0
    %1424 = vmatprep.subr.mxu0 0.0
    %1425 = vmatpush1.msra.mxu0 0.0
    %1426 = vmatprep.subr.mxu0 0.0
    %1427 = vmatpush1.msra.mxu0 0.0
    %1428 = vmatprep.subr.mxu0 0.0
    %1429 = vmatpush1.msra.mxu0 0.0
    %1430 = vmatprep.subr.mxu0 0.0
    %1431 = vmatpush1.msra.mxu0 0.0
    %1432 = vmatprep.subr.mxu0 0.0
    %1433 = vmatpush1.msra.mxu0 0.0
    %1434 = vmatprep.subr.mxu0 0.0
    %1435 = vmatpush1.msra.mxu0 0.0
    %1436 = vmatprep.subr.mxu0 0.0
    %1437 = vmatpush1.msra.mxu0 0.0
    %1438 = vmatprep.subr.mxu0 0.0
    %1439 = vmatpush1.msra.mxu0 0.0
    %1440 = vmatprep.subr.mxu0 0.0
    %1441 = vmatpush1.msra.mxu0 0.0
    %1442 = vmatprep.subr.mxu0 0.0
    %1443 = vmatpush1.msra.mxu0 0.0
    %1444 = vmatprep.subr.mxu0 0.0
    %1445 = vmatpush1.msra.mxu0 0.0
    %1446 = vmatprep.subr.mxu0 0.0
    %1447 = vmatpush1.msra.mxu0 0.0
    %1448 = vmatprep.mubr.f32.mxu0 0.0
    %1449 = vmatmul.mubr.f32.gmra.mrb[0].mxu0 %v941
    %v1450 = vpop.f32.mrb[0].mxu0
    %v1451 = vadd.f32 0.0, %v1450
    %v1452 = vpop.f32.mrb[0].mxu0
    %1453 = vmatprep.mubr.f32.mxu0 0.0
    %1454 = vmatmul.mubr.f32.gmra.mrb[0].mxu0 %v944
    %v1455 = vpop.f32.mrb[0].mxu0
    %v1456 = vadd.f32 0.0, %v1455
    %v1457 = vpop.f32.mrb[0].mxu0
    %1458 = vmatprep.mubr.f32.mxu0 0.0
    %1459 = vmatmul.mubr.f32.gmra.mrb[0].mxu0 %v947
    %v1460 = vpop.f32.mrb[0].mxu0
    %v1461 = vadd.f32 0.0, %v1460
    %v1462 = vpop.f32.mrb[0].mxu0
    %1463 = vmatprep.mubr.f32.mxu0 0.0
    %1464 = vmatmul.mubr.f32.gmra.mrb[0].mxu0 %v950
    %v1465 = vpop.f32.mrb[0].mxu0
    %v1466 = vadd.f32 0.0, %v1465
    %v1467 = vpop.f32.mrb[0].mxu0
    %1468 = vdwg.mxu0
    %v1469 = vadd.f32 %v1380, %v1451
    %v1470 = vadd.f32 %v1381, %v1456
    %v1471 = vadd.f32 %v1382, %v1461
    %v1472 = vadd.f32 %v1383, %v1466
    %v1473 = vtanh.pop %v1469
    %v1474 = vtanh.pop %v1470
    %v1475 = vtanh.pop %v1471
    %v1476 = vtanh.pop %v1472
    %vm1477 = vcmp.gt.s32.totalorder %v41, 4
    %v1478 = vsel %vm1477, 1, 0
    %v1479 = vlaneseq
    %v1480 = vshrl.u32 %v1479, 7
    %v1481 = vsub.s32 0, %v1480
    %v1482 = vrot.slane %v1478, %v1481
    %vm1483 = vcmp.eq.s32.totalorder %v1482, 1
    %v1484 = vsel %vm1483, %v1473, %v1376
    %v1485 = vsel %vm1483, %v1474, %v1377
    %v1486 = vsel %vm1483, %v1475, %v1378
    %v1487 = vsel %vm1483, %v1476, %v1379
    %v1488 = vld [vmem:[%s716] sm:$0xff]
    %v1489 = vld [vmem:[%s716 + $0x8] sm:$0xff]
    %v1490 = vld [vmem:[%s716 + $0x10] sm:$0xff]
    %v1491 = vld [vmem:[%s716 + $0x18] sm:$0xff]
    %1492 = vmatprep.subr.mxu0 0.0
    %1493 = vmatpush1.msra.mxu0 %v1484
    %1494 = vmatprep.subr.mxu0 0.0
    %1495 = vmatpush1.msra.mxu0 %v1485
    %1496 = vmatprep.subr.mxu0 0.0
    %1497 = vmatpush1.msra.mxu0 %v1486
    %1498 = vmatprep.subr.mxu0 0.0
    %1499 = vmatpush1.msra.mxu0 %v1487
    %1500 = vmatprep.subr.mxu0 0.0
    %1501 = vmatpush1.msra.mxu0 0.0
    %1502 = vmatprep.subr.mxu0 0.0
    %1503 = vmatpush1.msra.mxu0 0.0
    %1504 = vmatprep.subr.mxu0 0.0
    %1505 = vmatpush1.msra.mxu0 0.0
    %1506 = vmatprep.subr.mxu0 0.0
    %1507 = vmatpush1.msra.mxu0 0.0
    %1508 = vmatprep.subr.mxu0 0.0
    %1509 = vmatpush1.msra.mxu0 0.0
    %1510 = vmatprep.subr.mxu0 0.0
    %1511 = vmatpush1.msra.mxu0 0.0
    %1512 = vmatprep.subr.mxu0 0.0
    %1513 = vmatpush1.msra.mxu0 0.0
    %1514 = vmatprep.subr.mxu0 0.0
    %1515 = vmatpush1.msra.mxu0 0.0
    %1516 = vmatprep.subr.mxu0 0.0
    %1517 = vmatpush1.msra.mxu0 0.0
    %1518 = vmatprep.subr.mxu0 0.0
    %1519 = vmatpush1.msra.mxu0 0.0
    %1520 = vmatprep.subr.mxu0 0.0
    %1521 = vmatpush1.msra.mxu0 0.0
    %1522 = vmatprep.subr.mxu0 0.0
    %1523 = vmatpush1.msra.mxu0 0.0
    %1524 = vmatprep.subr.mxu0 0.0
    %1525 = vmatpush1.msra.mxu0 0.0
    %1526 = vmatprep.subr.mxu0 0.0
    %1527 = vmatpush1.msra.mxu0 0.0
    %1528 = vmatprep.subr.mxu0 0.0
    %1529 = vmatpush1.msra.mxu0 0.0
    %1530 = vmatprep.subr.mxu0 0.0
    %1531 = vmatpush1.msra.mxu0 0.0
    %1532 = vmatprep.subr.mxu0 0.0
    %1533 = vmatpush1.msra.mxu0 0.0
    %1534 = vmatprep.subr.mxu0 0.0
    %1535 = vmatpush1.msra.mxu0 0.0
    %1536 = vmatprep.subr.mxu0 0.0
    %1537 = vmatpush1.msra.mxu0 0.0
    %1538 = vmatprep.subr.mxu0 0.0
    %1539 = vmatpush1.msra.mxu0 0.0
    %1540 = vmatprep.subr.mxu0 0.0
    %1541 = vmatpush1.msra.mxu0 0.0
    %1542 = vmatprep.subr.mxu0 0.0
    %1543 = vmatpush1.msra.mxu0 0.0
    %1544 = vmatprep.subr.mxu0 0.0
    %1545 = vmatpush1.msra.mxu0 0.0
    %1546 = vmatprep.subr.mxu0 0.0
    %1547 = vmatpush1.msra.mxu0 0.0
    %1548 = vmatprep.subr.mxu0 0.0
    %1549 = vmatpush1.msra.mxu0 0.0
    %1550 = vmatprep.subr.mxu0 0.0
    %1551 = vmatpush1.msra.mxu0 0.0
    %1552 = vmatprep.subr.mxu0 0.0
    %1553 = vmatpush1.msra.mxu0 0.0
    %1554 = vmatprep.subr.mxu0 0.0
    %1555 = vmatpush1.msra.mxu0 0.0
    %1556 = vmatprep.mubr.f32.mxu0 0.0
    %1557 = vmatmul.mubr.f32.gmra.mrb[0].mxu0 %v941
    %v1558 = vpop.f32.mrb[0].mxu0
    %v1559 = vadd.f32 0.0, %v1558
    %v1560 = vpop.f32.mrb[0].mxu0
    %1561 = vmatprep.mubr.f32.mxu0 0.0
    %1562 = vmatmul.mubr.f32.gmra.mrb[0].mxu0 %v944
    %v1563 = vpop.f32.mrb[0].mxu0
    %v1564 = vadd.f32 0.0, %v1563
    %v1565 = vpop.f32.mrb[0].mxu0
    %1566 = vmatprep.mubr.f32.mxu0 0.0
    %1567 = vmatmul.mubr.f32.gmra.mrb[0].mxu0 %v947
    %v1568 = vpop.f32.mrb[0].mxu0
    %v1569 = vadd.f32 0.0, %v1568
    %v1570 = vpop.f32.mrb[0].mxu0
    %1571 = vmatprep.mubr.f32.mxu0 0.0
    %1572 = vmatmul.mubr.f32.gmra.mrb[0].mxu0 %v950
    %v1573 = vpop.f32.mrb[0].mxu0
    %v1574 = vadd.f32 0.0, %v1573
    %v1575 = vpop.f32.mrb[0].mxu0
    %1576 = vdwg.mxu0
    %v1577 = vadd.f32 %v1488, %v1559
    %v1578 = vadd.f32 %v1489, %v1564
    %v1579 = vadd.f32 %v1490, %v1569
    %v1580 = vadd.f32 %v1491, %v1574
    %v1581 = vtanh.pop %v1577
    %v1582 = vtanh.pop %v1578
    %v1583 = vtanh.pop %v1579
    %v1584 = vtanh.pop %v1580
    %vm1585 = vcmp.gt.s32.totalorder %v41, 5
    %v1586 = vsel %vm1585, 1, 0
    %v1587 = vlaneseq
    %v1588 = vshrl.u32 %v1587, 7
    %v1589 = vsub.s32 0, %v1588
    %v1590 = vrot.slane %v1586, %v1589
    %vm1591 = vcmp.eq.s32.totalorder %v1590, 1
    %v1592 = vsel %vm1591, %v1581, %v1484
    %v1593 = vsel %vm1591, %v1582, %v1485
    %v1594 = vsel %vm1591, %v1583, %v1486
    %v1595 = vsel %vm1591, %v1584, %v1487
    %v1596 = vld [vmem:[%s823] sm:$0xff]
    %v1597 = vld [vmem:[%s823 + $0x8] sm:$0xff]
    %v1598 = vld [vmem:[%s823 + $0x10] sm:$0xff]
    %v1599 = vld [vmem:[%s823 + $0x18] sm:$0xff]
    %1600 = vmatprep.subr.mxu0 0.0
    %1601 = vmatpush1.msra.mxu0 %v1592
    %1602 = vmatprep.subr.mxu0 0.0
    %1603 = vmatpush1.msra.mxu0 %v1593
    %1604 = vmatprep.subr.mxu0 0.0
    %1605 = vmatpush1.msra.mxu0 %v1594
    %1606 = vmatprep.subr.mxu0 0.0
    %1607 = vmatpush1.msra.mxu0 %v1595
    %1608 = vmatprep.subr.mxu0 0.0
    %1609 = vmatpush1.msra.mxu0 0.0
    %1610 = vmatprep.subr.mxu0 0.0
    %1611 = vmatpush1.msra.mxu0 0.0
    %1612 = vmatprep.subr.mxu0 0.0
    %1613 = vmatpush1.msra.mxu0 0.0
    %1614 = vmatprep.subr.mxu0 0.0
    %1615 = vmatpush1.msra.mxu0 0.0
    %1616 = vmatprep.subr.mxu0 0.0
    %1617 = vmatpush1.msra.mxu0 0.0
    %1618 = vmatprep.subr.mxu0 0.0
    %1619 = vmatpush1.msra.mxu0 0.0
    %1620 = vmatprep.subr.mxu0 0.0
    %1621 = vmatpush1.msra.mxu0 0.0
    %1622 = vmatprep.subr.mxu0 0.0
    %1623 = vmatpush1.msra.mxu0 0.0
    %1624 = vmatprep.subr.mxu0 0.0
    %1625 = vmatpush1.msra.mxu0 0.0
    %1626 = vmatprep.subr.mxu0 0.0
    %1627 = vmatpush1.msra.mxu0 0.0
    %1628 = vmatprep.subr.mxu0 0.0
    %1629 = vmatpush1.msra.mxu0 0.0
    %1630 = vmatprep.subr.mxu0 0.0
    %1631 = vmatpush1.msra.mxu0 0.0
    %1632 = vmatprep.subr.mxu0 0.0
    %1633 = vmatpush1.msra.mxu0 0.0
    %1634 = vmatprep.subr.mxu0 0.0
    %1635 = vmatpush1.msra.mxu0 0.0
    %1636 = vmatprep.subr.mxu0 0.0
    %1637 = vmatpush1.msra.mxu0 0.0
    %1638 = vmatprep.subr.mxu0 0.0
    %1639 = vmatpush1.msra.mxu0 0.0
    %1640 = vmatprep.subr.mxu0 0.0
    %1641 = vmatpush1.msra.mxu0 0.0
    %1642 = vmatprep.subr.mxu0 0.0
    %1643 = vmatpush1.msra.mxu0 0.0
    %1644 = vmatprep.subr.mxu0 0.0
    %1645 = vmatpush1.msra.mxu0 0.0
    %1646 = vmatprep.subr.mxu0 0.0
    %1647 = vmatpush1.msra.mxu0 0.0
    %1648 = vmatprep.subr.mxu0 0.0
    %1649 = vmatpush1.msra.mxu0 0.0
    %1650 = vmatprep.subr.mxu0 0.0
    %1651 = vmatpush1.msra.mxu0 0.0
    %1652 = vmatprep.subr.mxu0 0.0
    %1653 = vmatpush1.msra.mxu0 0.0
    %1654 = vmatprep.subr.mxu0 0.0
    %1655 = vmatpush1.msra.mxu0 0.0
    %1656 = vmatprep.subr.mxu0 0.0
    %1657 = vmatpush1.msra.mxu0 0.0
    %1658 = vmatprep.subr.mxu0 0.0
    %1659 = vmatpush1.msra.mxu0 0.0
    %1660 = vmatprep.subr.mxu0 0.0
    %1661 = vmatpush1.msra.mxu0 0.0
    %1662 = vmatprep.subr.mxu0 0.0
    %1663 = vmatpush1.msra.mxu0 0.0
    %1664 = vmatprep.mubr.f32.mxu0 0.0
    %1665 = vmatmul.mubr.f32.gmra.mrb[0].mxu0 %v941
    %v1666 = vpop.f32.mrb[0].mxu0
    %v1667 = vadd.f32 0.0, %v1666
    %v1668 = vpop.f32.mrb[0].mxu0
    %1669 = vmatprep.mubr.f32.mxu0 0.0
    %1670 = vmatmul.mubr.f32.gmra.mrb[0].mxu0 %v944
    %v1671 = vpop.f32.mrb[0].mxu0
    %v1672 = vadd.f32 0.0, %v1671
    %v1673 = vpop.f32.mrb[0].mxu0
    %1674 = vmatprep.mubr.f32.mxu0 0.0
    %1675 = vmatmul.mubr.f32.gmra.mrb[0].mxu0 %v947
    %v1676 = vpop.f32.mrb[0].mxu0
    %v1677 = vadd.f32 0.0, %v1676
    %v1678 = vpop.f32.mrb[0].mxu0
    %1679 = vmatprep.mubr.f32.mxu0 0.0
    %1680 = vmatmul.mubr.f32.gmra.mrb[0].mxu0 %v950
    %v1681 = vpop.f32.mrb[0].mxu0
    %v1682 = vadd.f32 0.0, %v1681
    %v1683 = vpop.f32.mrb[0].mxu0
    %1684 = vdwg.mxu0
    %v1685 = vadd.f32 %v1596, %v1667
    %v1686 = vadd.f32 %v1597, %v1672
    %v1687 = vadd.f32 %v1598, %v1677
    %v1688 = vadd.f32 %v1599, %v1682
    %v1689 = vtanh.pop %v1685
    %v1690 = vtanh.pop %v1686
    %v1691 = vtanh.pop %v1687
    %v1692 = vtanh.pop %v1688
    %vm1693 = vcmp.gt.s32.totalorder %v41, 6
    %v1694 = vsel %vm1693, 1, 0
    %v1695 = vlaneseq
    %v1696 = vshrl.u32 %v1695, 7
    %v1697 = vsub.s32 0, %v1696
    %v1698 = vrot.slane %v1694, %v1697
    %vm1699 = vcmp.eq.s32.totalorder %v1698, 1
    %v1700 = vsel %vm1699, %v1689, %v1592
    %v1701 = vsel %vm1699, %v1690, %v1593
    %v1702 = vsel %vm1699, %v1691, %v1594
    %v1703 = vsel %vm1699, %v1692, %v1595
    %v1704 = vld [vmem:[%s930] sm:$0xff]
    %v1705 = vld [vmem:[%s930 + $0x8] sm:$0xff]
    %v1706 = vld [vmem:[%s930 + $0x10] sm:$0xff]
    %v1707 = vld [vmem:[%s930 + $0x18] sm:$0xff]
    %1708 = vmatprep.subr.mxu0 0.0
    %1709 = vmatpush1.msra.mxu0 %v1700
    %1710 = vmatprep.subr.mxu0 0.0
    %1711 = vmatpush1.msra.mxu0 %v1701
    %1712 = vmatprep.subr.mxu0 0.0
    %1713 = vmatpush1.msra.mxu0 %v1702
    %1714 = vmatprep.subr.mxu0 0.0
    %1715 = vmatpush1.msra.mxu0 %v1703
    %1716 = vmatprep.subr.mxu0 0.0
    %1717 = vmatpush1.msra.mxu0 0.0
    %1718 = vmatprep.subr.mxu0 0.0
    %1719 = vmatpush1.msra.mxu0 0.0
    %1720 = vmatprep.subr.mxu0 0.0
    %1721 = vmatpush1.msra.mxu0 0.0
    %1722 = vmatprep.subr.mxu0 0.0
    %1723 = vmatpush1.msra.mxu0 0.0
    %1724 = vmatprep.subr.mxu0 0.0
    %1725 = vmatpush1.msra.mxu0 0.0
    %1726 = vmatprep.subr.mxu0 0.0
    %1727 = vmatpush1.msra.mxu0 0.0
    %1728 = vmatprep.subr.mxu0 0.0
    %1729 = vmatpush1.msra.mxu0 0.0
    %1730 = vmatprep.subr.mxu0 0.0
    %1731 = vmatpush1.msra.mxu0 0.0
    %1732 = vmatprep.subr.mxu0 0.0
    %1733 = vmatpush1.msra.mxu0 0.0
    %1734 = vmatprep.subr.mxu0 0.0
    %1735 = vmatpush1.msra.mxu0 0.0
    %1736 = vmatprep.subr.mxu0 0.0
    %1737 = vmatpush1.msra.mxu0 0.0
    %1738 = vmatprep.subr.mxu0 0.0
    %1739 = vmatpush1.msra.mxu0 0.0
    %1740 = vmatprep.subr.mxu0 0.0
    %1741 = vmatpush1.msra.mxu0 0.0
    %1742 = vmatprep.subr.mxu0 0.0
    %1743 = vmatpush1.msra.mxu0 0.0
    %1744 = vmatprep.subr.mxu0 0.0
    %1745 = vmatpush1.msra.mxu0 0.0
    %1746 = vmatprep.subr.mxu0 0.0
    %1747 = vmatpush1.msra.mxu0 0.0
    %1748 = vmatprep.subr.mxu0 0.0
    %1749 = vmatpush1.msra.mxu0 0.0
    %1750 = vmatprep.subr.mxu0 0.0
    %1751 = vmatpush1.msra.mxu0 0.0
    %1752 = vmatprep.subr.mxu0 0.0
    %1753 = vmatpush1.msra.mxu0 0.0
    %1754 = vmatprep.subr.mxu0 0.0
    %1755 = vmatpush1.msra.mxu0 0.0
    %1756 = vmatprep.subr.mxu0 0.0
    %1757 = vmatpush1.msra.mxu0 0.0
    %1758 = vmatprep.subr.mxu0 0.0
    %1759 = vmatpush1.msra.mxu0 0.0
    %1760 = vmatprep.subr.mxu0 0.0
    %1761 = vmatpush1.msra.mxu0 0.0
    %1762 = vmatprep.subr.mxu0 0.0
    %1763 = vmatpush1.msra.mxu0 0.0
    %1764 = vmatprep.subr.mxu0 0.0
    %1765 = vmatpush1.msra.mxu0 0.0
    %1766 = vmatprep.subr.mxu0 0.0
    %1767 = vmatpush1.msra.mxu0 0.0
    %1768 = vmatprep.subr.mxu0 0.0
    %1769 = vmatpush1.msra.mxu0 0.0
    %1770 = vmatprep.subr.mxu0 0.0
    %1771 = vmatpush1.msra.mxu0 0.0
    %1772 = vmatprep.mubr.f32.mxu0 0.0
    %1773 = vmatmul.mubr.f32.gmra.mrb[0].mxu0 %v941
    %v1774 = vpop.f32.mrb[0].mxu0
    %v1775 = vadd.f32 0.0, %v1774
    %v1776 = vpop.f32.mrb[0].mxu0
    %1777 = vmatprep.mubr.f32.mxu0 0.0
    %1778 = vmatmul.mubr.f32.gmra.mrb[0].mxu0 %v944
    %v1779 = vpop.f32.mrb[0].mxu0
    %v1780 = vadd.f32 0.0, %v1779
    %v1781 = vpop.f32.mrb[0].mxu0
    %1782 = vmatprep.mubr.f32.mxu0 0.0
    %1783 = vmatmul.mubr.f32.gmra.mrb[0].mxu0 %v947
    %v1784 = vpop.f32.mrb[0].mxu0
    %v1785 = vadd.f32 0.0, %v1784
    %v1786 = vpop.f32.mrb[0].mxu0
    %1787 = vmatprep.mubr.f32.mxu0 0.0
    %1788 = vmatmul.mubr.f32.gmra.mrb[0].mxu0 %v950
    %v1789 = vpop.f32.mrb[0].mxu0
    %v1790 = vadd.f32 0.0, %v1789
    %v1791 = vpop.f32.mrb[0].mxu0
    %1792 = vdwg.mxu0
    %v1793 = vadd.f32 %v1704, %v1775
    %v1794 = vadd.f32 %v1705, %v1780
    %v1795 = vadd.f32 %v1706, %v1785
    %v1796 = vadd.f32 %v1707, %v1790
    %v1797 = vtanh.pop %v1793
    %v1798 = vtanh.pop %v1794
    %v1799 = vtanh.pop %v1795
    %v1800 = vtanh.pop %v1796
    %vm1801 = vcmp.gt.s32.totalorder %v41, 7
    %v1802 = vsel %vm1801, 1, 0
    %v1803 = vlaneseq
    %v1804 = vshrl.u32 %v1803, 7
    %v1805 = vsub.s32 0, %v1804
    %v1806 = vrot.slane %v1802, %v1805
    %vm1807 = vcmp.eq.s32.totalorder %v1806, 1
    %v1808 = vsel %vm1807, %v1797, %v1700
    %v1809 = vsel %vm1807, %v1798, %v1701
    %v1810 = vsel %vm1807, %v1799, %v1702
    %v1811 = vsel %vm1807, %v1800, %v1703
    %v1812 = vld [vmem:[%s5] sm:$0xff]
    %v1813 = vld [vmem:[%s5 + $0x8] sm:$0xff]
    %v1814 = vld [vmem:[%s5 + $0x10] sm:$0xff]
    %v1815 = vld [vmem:[%s5 + $0x18] sm:$0xff]
    %1817 = vset.pattern.permute.xlu0 0
    %1818 = vperm.xlu0 %1817, %v1812
    %v1819 = vpop.permute.xlu0 %1818
    %1822 = vset.pattern.permute.xlu0 0
    %1823 = vperm.xlu0 %1822, %v1813
    %v1824 = vpop.permute.xlu0 %1823
    %1827 = vset.pattern.permute.xlu0 0
    %1828 = vperm.xlu0 %1827, %v1814
    %v1829 = vpop.permute.xlu0 %1828
    %1832 = vset.pattern.permute.xlu0 0
    %1833 = vperm.xlu0 %1832, %v1815
    %v1834 = vpop.permute.xlu0 %1833
    %v1836 = vmul.f32 %v1808, %v1819
    %v1837 = vmul.f32 %v1809, %v1824
    %v1838 = vmul.f32 %v1810, %v1829
    %v1839 = vmul.f32 %v1811, %v1834
    %v1840 = vadd.f32 %v1836, %v1837
    %v1841 = vadd.f32 %v1840, %v1838
    %v1842 = vadd.f32 %v1841, %v1839
    %v1843 = vrot.slane %v1842, 4
    %v1844 = vadd.f32 %v1842, %v1843
    %v1845 = vrot.slane %v1844, 2
    %v1846 = vadd.f32 %v1844, %v1845
    %v1847 = vrot.slane %v1846, 1
    %v1848 = vadd.f32 %v1846, %v1847
    %v1849 = vld [vmem:[#allocation3] sm:$0x1]
    %1851 = vset.pattern.permute.xlu0 0
    %1852 = vperm.xlu0 %1851, %v1849
    %v1853 = vpop.permute.xlu0 %1852
    %v1855 = vlaneseq
    %v1856 = vshrl.u32 %v1855, 7
    %v1857 = vsub.s32 0, %v1856
    %v1858 = vrot.slane %v1853, %v1857
    %v1859 = vadd.f32 %v1848, %v1858
    %1860 = vst [vmem:[#allocation4] sm:$0x1] %v1859
    // Predicated region
    $region30: #{tpu_custom_call.1} parent=1 // pred_check
      _
    $region31: #{tpu_custom_call.1} parent=1 // pred_check_branch
      %1862 = sbr.rel (0) target = $region33
    $region32: #{tpu_custom_call.1} parent=1 // pred_region
      %s1864 = ssub.s32 16, 16
      %1865 = vsyncadd [#allocation5], %s1864
      %s1867 = sshll.u32 [#allocation4], 4
      %s1868 = int_to_ptr.vmem [resolvable:$true] %s1867
      %1870 = dma.vmem_to_hbm [thread:$0]  %s1868, 16, %s7, [#allocation5]
    $region33: #{tpu_custom_call.1} parent=1 // pred_fallthru
      _
    // Predicated region
    $region34: #{tpu_custom_call.1} parent=1 // pred_check
      _
    $region35: #{tpu_custom_call.1} parent=1 // pred_check_branch
      %1872 = sbr.rel (0) target = $region37
    $region36: #{tpu_custom_call.1} parent=1 // pred_region
      %1873 = dma.done [#allocation5], 16
    $region37: #{tpu_custom_call.1} parent=1 // pred_fallthru
      _
    %1874 = vsyncpa [#allocation5], 1

</llo_original>
